<compile_context>
chip_gen: v6e
topology: v6e:2x2x1
jax: 0.10.0
libtpu: 0.0.40
codegen_flags: <defaults>
</compile_context>

<pallas_src>
import math

import jax
import jax.numpy as jnp
import numpy as np
from jax.experimental import pallas as pl
from jax.experimental.pallas import tpu as pltpu

# ---- small, module-consistent sizes -----------------------------------------
B = 2            # batch
T = 16           # seq_len
C = 32           # n_embd
H = 4            # n_head
D = C // H       # head dim
BT = B * T       # 32 rows: both batch elements stacked
HBT = H * BT     # 128 score columns: all heads side by side (lane-dense)
MLP_HID = 4 * C  # 128 (lane-dense hidden)
EPS = 1e-5
SCALE = 1.0 / math.sqrt(D)
NEG = -1e30      # finite "-inf": exp(NEG - m) -> exactly 0, never NaN/inf


# ---- hoisted constants (built once; previously rebuilt with broadcasted_iota
#      inside the kernel every call -> dominant VALU cost) ---------------------
def _build_constants():
    r = np.arange(HBT)
    c = np.arange(C)
    i = np.arange(BT)
    col = np.arange(HBT)
    j = col % BT
    # (HBT, BT) one-hot row replication: row r copies k/v row r % BT (via MXU)
    rep = (np.arange(BT)[None, :] == (r % BT)[:, None]).astype(np.float32)
    # (HBT, C) head channel mask: keep only head (r // BT)'s D channels
    hmask = ((c[None, :] // D) == (r // BT)[:, None]).astype(np.float32)
    # (BT, HBT) additive block-diag (same batch) + causal mask
    allowed = ((j[None, :] // T) == (i[:, None] // T)) & \
              ((j[None, :] % T) <= (i[:, None] % T))
    amask = np.where(allowed, 0.0, NEG).astype(np.float32)
    # (H, HBT) one-hot head-block expand (per-head scalar -> that head's columns)
    expand = ((col[None, :] // BT) == np.arange(H)[:, None]).astype(np.float32)
    # (HBT, T) head mean with 1/H folded in; cross-batch att entries are exactly
    # 0, so this directly produces the per-batch diagonal (T,T) blocks.
    hmean = (((col[:, None] % T) == np.arange(T)[None, :]).astype(np.float32) / H)
    return tuple(jnp.asarray(a) for a in (rep, hmask, amask, expand, hmean))


REP, HMASK, AMASK, EXPAND, HMEAN = _build_constants()


def _layernorm(v, g, b):
    mu = jnp.mean(v, axis=-1, keepdims=True)
    var = jnp.mean((v - mu) ** 2, axis=-1, keepdims=True)
    return (v - mu) * jax.lax.rsqrt(var + EPS) * g + b


def _gelu_exact(v):
    # matches torch.nn.GELU() (erf-based)
    return 0.5 * v * (1.0 + jax.lax.erf(v * (1.0 / math.sqrt(2.0))))


def block_kernel(x_ref,
                 ln1g_ref, ln1b_ref, wqkv_ref, bqkv_ref, wp_ref, bp_ref,
                 ln2g_ref, ln2b_ref, w1_ref, b1_ref, w2_ref, b2_ref,
                 rep_ref, hmask_ref, amask_ref, expand_ref, hmean_ref,
                 out_ref, att_ref):
    """Single invocation: whole batch as a (B*T, C) slab, params/constants in VMEM."""
    bf16 = jnp.bfloat16
    x = x_ref[...]                                               # (BT, C) f32

    # ---------------- attention branch ----------------
    h = _layernorm(x, ln1g_ref[...], ln1b_ref[...])
    qkv = jnp.dot(h.astype(bf16), wqkv_ref[...],
                  preferred_element_type=jnp.float32) + bqkv_ref[...]   # (BT, 3C)
    q = qkv[:, 0 * C:1 * C]        # SCALE already folded into wq/bq columns
    k = qkv[:, 1 * C:2 * C]
    v = qkv[:, 2 * C:3 * C]

    # Head-blocked K/V: one-hot MXU replication + hoisted channel mask.
    # Row r of the (HBT, C) operand belongs to head r // BT; only that head's
    # D channels are kept.  One matmul then yields every head's scores/outputs.
    hmask = hmask_ref[...]
    k_big = jnp.dot(rep_ref[...], k, preferred_element_type=jnp.float32) * hmask
    v_big = jnp.dot(rep_ref[...], v, preferred_element_type=jnp.float32) * hmask

    # all-head scores (BT, HBT) + additive block-diag causal mask (hoisted)
    s = jax.lax.dot_general(q.astype(bf16), k_big.astype(bf16),
                            (((1,), (1,)), ((), ())),
                            preferred_element_type=jnp.float32)
    s = s + amask_ref[...]

    # per-head-block softmax (numerically stable per head, not per full row)
    expand = expand_ref[...]                                     # (H, HBT)
    m_full = None
    for hd in range(H):
        blk_max = jnp.max(s[:, hd * BT:(hd + 1) * BT], axis=-1, keepdims=True)
        contrib = blk_max * expand[hd:hd + 1, :]                 # (BT, HBT)
        m_full = contrib if m_full is None else m_full + contrib
    e = jnp.exp(s - m_full)                       # masked entries -> exact 0.0

    # per-head denominators on the MXU, reciprocal on the (idle) EUP
    denom = jax.lax.dot_general(e, expand, (((1,), (1,)), ((), ())),
                                preferred_element_type=jnp.float32)     # (BT, H)
    inv = pl.reciprocal(denom, approx=True)
    att = e * jnp.dot(inv, expand, preferred_element_type=jnp.float32)  # (BT, HBT)

    # head-averaged, per-batch-diagonal attention -> (BT, T) (1/H folded in)
    att_ref[...] = jnp.dot(att, hmean_ref[...],
                           preferred_element_type=jnp.float32)

    # att @ v_big lands each head's output in its own channel slice of (BT, C)
    y = jnp.dot(att.astype(bf16), v_big.astype(bf16),
                preferred_element_type=jnp.float32)
    y = jnp.dot(y.astype(bf16), wp_ref[...],
                preferred_element_type=jnp.float32) + bp_ref[...]
    x = x + y                                                    # first residual

    # ---------------- MLP branch ----------------
    h2 = _layernorm(x, ln2g_ref[...], ln2b_ref[...])
    mlp = jnp.dot(h2.astype(bf16), w1_ref[...],
                  preferred_element_type=jnp.float32) + b1_ref[...]
    mlp = _gelu_exact(mlp)
    mlp = jnp.dot(mlp.astype(bf16), w2_ref[...],
                  preferred_element_type=jnp.float32) + b2_ref[...]
    out_ref[...] = x + mlp                                       # second residual


@jax.jit
def block_forward(x, weights):
    x2d = x.reshape(BT, C)
    args = (x2d, *weights, REP, HMASK, AMASK, EXPAND, HMEAN)
    in_specs = [pl.BlockSpec(a.shape, lambda i: (0, 0)) for a in args]

    out2d, att2d = pl.pallas_call(
        block_kernel,
        grid=(1,),
        in_specs=in_specs,
        out_specs=(pl.BlockSpec((BT, C), lambda i: (0, 0)),
                   pl.BlockSpec((BT, T), lambda i: (0, 0))),
        out_shape=(jax.ShapeDtypeStruct((BT, C), jnp.float32),
                   jax.ShapeDtypeStruct((BT, T), jnp.float32)),
        compiler_params=pltpu.CompilerParams(
            dimension_semantics=("arbitrary",)),
    )(*args)

    return out2d.reshape(B, T, C), att2d.reshape(B, T, T)


def prepare_weights(params):
    """One-time (not per-call) fusion: QKV concat, SCALE fold, bf16 MXU weights."""
    wqkv = jnp.concatenate([params["wq"] * SCALE, params["wk"], params["wv"]], axis=1)
    bqkv = jnp.concatenate([params["bq"] * SCALE, params["bk"], params["bv"]], axis=1)
    return (params["ln1g"], params["ln1b"],
            wqkv.astype(jnp.bfloat16), bqkv,
            params["wp"].astype(jnp.bfloat16), params["bp"],
            params["ln2g"], params["ln2b"],
            params["w1"].astype(jnp.bfloat16), params["b1"],
            params["w2"].astype(jnp.bfloat16), params["b2"])


# ---------------- pure-JAX reference (for correctness check) ----------------
def reference(x, p):
    def ln(v, g, b):
        mu = v.mean(-1, keepdims=True)
        var = ((v - mu) ** 2).mean(-1, keepdims=True)
        return (v - mu) / jnp.sqrt(var + EPS) * g + b

    h = ln(x, p["ln1g"], p["ln1b"])
    q = (h @ p["wq"] + p["bq"]).reshape(B, T, H, D).transpose(0, 2, 1, 3)
    k = (h @ p["wk"] + p["bk"]).reshape(B, T, H, D).transpose(0, 2, 1, 3)
    v = (h @ p["wv"] + p["bv"]).reshape(B, T, H, D).transpose(0, 2, 1, 3)
    att = jnp.einsum("bhtd,bhsd->bhts", q, k) * SCALE
    causal = jnp.tril(jnp.ones((T, T), bool))
    att = jnp.where(causal[None, None], att, -jnp.inf)
    att = jax.nn.softmax(att, axis=-1)
    y = jnp.einsum("bhts,bhsd->bhtd", att, v).transpose(0, 2, 1, 3).reshape(B, T, C)
    att_mean = att.mean(axis=1)
    y = y @ p["wp"] + p["bp"]
    x = x + y
    h2 = ln(x, p["ln2g"], p["ln2b"])
    m = h2 @ p["w1"] + p["b1"]
    m = 0.5 * m * (1.0 + jax.lax.erf(m / math.sqrt(2.0)))
    m = m @ p["w2"] + p["b2"]
    return x + m, att_mean


def make_params(key):
    ks = jax.random.split(key, 8)
    s = 0.02
    return {
        "ln1g": jnp.ones((1, C), jnp.float32),
        "ln1b": jnp.zeros((1, C), jnp.float32),
        "wq": jax.random.normal(ks[0], (C, C), jnp.float32) * s,
        "bq": jnp.zeros((1, C), jnp.float32),
        "wk": jax.random.normal(ks[1], (C, C), jnp.float32) * s,
        "bk": jnp.zeros((1, C), jnp.float32),
        "wv": jax.random.normal(ks[2], (C, C), jnp.float32) * s,
        "bv": jnp.zeros((1, C), jnp.float32),
        "wp": jax.random.normal(ks[3], (C, C), jnp.float32) * s,
        "bp": jnp.zeros((1, C), jnp.float32),
        "ln2g": jnp.ones((1, C), jnp.float32),
        "ln2b": jnp.zeros((1, C), jnp.float32),
        "w1": jax.random.normal(ks[4], (C, MLP_HID), jnp.float32) * s,
        "b1": jnp.zeros((1, MLP_HID), jnp.float32),
        "w2": jax.random.normal(ks[5], (MLP_HID, C), jnp.float32) * s,
        "b2": jnp.zeros((1, C), jnp.float32),
    }


if __name__ == "__main__":
    key = jax.random.PRNGKey(0)
    kx, kp = jax.random.split(key)
    x = jax.random.normal(kx, (B, T, C), jnp.float32)
    params = make_params(kp)
    weights = prepare_weights(params)       # one-time fusion, outside the call path

    out, att = block_forward(x, weights)
    out = jax.block_until_ready(out)
    att = jax.block_until_ready(att)

    ref_out, ref_att = reference(x, params)
    # tolerance loosened vs the f32 reference: bf16 MXU operands + approx reciprocal
    np.testing.assert_allclose(np.asarray(out), np.asarray(ref_out),
                               rtol=5e-3, atol=5e-3)
    np.testing.assert_allclose(np.asarray(att), np.asarray(ref_att),
                               rtol=5e-3, atol=5e-3)

    print("KERNEL_OK")
</pallas_src>

<mosaic_0001>
module attributes {stable_mosaic.version = 11 : i64} {
  func.func @block_kernel(%arg0: i32, %arg1: memref<32x32xf32, #tpu.memory_space<vmem>>, %arg2: memref<1x32xf32, #tpu.memory_space<vmem>>, %arg3: memref<1x32xf32, #tpu.memory_space<vmem>>, %arg4: memref<32x96xbf16, #tpu.memory_space<vmem>>, %arg5: memref<1x96xf32, #tpu.memory_space<vmem>>, %arg6: memref<32x32xbf16, #tpu.memory_space<vmem>>, %arg7: memref<1x32xf32, #tpu.memory_space<vmem>>, %arg8: memref<1x32xf32, #tpu.memory_space<vmem>>, %arg9: memref<1x32xf32, #tpu.memory_space<vmem>>, %arg10: memref<32x128xbf16, #tpu.memory_space<vmem>>, %arg11: memref<1x128xf32, #tpu.memory_space<vmem>>, %arg12: memref<128x32xbf16, #tpu.memory_space<vmem>>, %arg13: memref<1x32xf32, #tpu.memory_space<vmem>>, %arg14: memref<128x32xf32, #tpu.memory_space<vmem>>, %arg15: memref<128x32xf32, #tpu.memory_space<vmem>>, %arg16: memref<32x128xf32, #tpu.memory_space<vmem>>, %arg17: memref<4x128xf32, #tpu.memory_space<vmem>>, %arg18: memref<128x16xf32, #tpu.memory_space<vmem>>, %arg19: memref<32x32xf32, #tpu.memory_space<vmem>>, %arg20: memref<32x16xf32, #tpu.memory_space<vmem>>) attributes {dimension_semantics = [#tpu.dimension_semantics<arbitrary>], iteration_bounds = array<i64: 1>, scalar_prefetch = 0 : i64, scratch_operands = 0 : i64, tpu.core_type = #tpu.core_type<tc>, window_params = [{pipeline_mode = #tpu.pipeline_mode<synchronous>, transform_indices = @transform_0, window_bounds = array<i64: 32, 32>}, {pipeline_mode = #tpu.pipeline_mode<synchronous>, transform_indices = @transform_1, window_bounds = array<i64: 1, 32>}, {pipeline_mode = #tpu.pipeline_mode<synchronous>, transform_indices = @transform_2, window_bounds = array<i64: 1, 32>}, {pipeline_mode = #tpu.pipeline_mode<synchronous>, transform_indices = @transform_3, window_bounds = array<i64: 32, 96>}, {pipeline_mode = #tpu.pipeline_mode<synchronous>, transform_indices = @transform_4, window_bounds = array<i64: 1, 96>}, {pipeline_mode = #tpu.pipeline_mode<synchronous>, transform_indices = @transform_5, window_bounds = array<i64: 32, 32>}, {pipeline_mode = #tpu.pipeline_mode<synchronous>, transform_indices = @transform_6, window_bounds = array<i64: 1, 32>}, {pipeline_mode = #tpu.pipeline_mode<synchronous>, transform_indices = @transform_7, window_bounds = array<i64: 1, 32>}, {pipeline_mode = #tpu.pipeline_mode<synchronous>, transform_indices = @transform_8, window_bounds = array<i64: 1, 32>}, {pipeline_mode = #tpu.pipeline_mode<synchronous>, transform_indices = @transform_9, window_bounds = array<i64: 32, 128>}, {pipeline_mode = #tpu.pipeline_mode<synchronous>, transform_indices = @transform_10, window_bounds = array<i64: 1, 128>}, {pipeline_mode = #tpu.pipeline_mode<synchronous>, transform_indices = @transform_11, window_bounds = array<i64: 128, 32>}, {pipeline_mode = #tpu.pipeline_mode<synchronous>, transform_indices = @transform_12, window_bounds = array<i64: 1, 32>}, {pipeline_mode = #tpu.pipeline_mode<synchronous>, transform_indices = @transform_13, window_bounds = array<i64: 128, 32>}, {pipeline_mode = #tpu.pipeline_mode<synchronous>, transform_indices = @transform_14, window_bounds = array<i64: 128, 32>}, {pipeline_mode = #tpu.pipeline_mode<synchronous>, transform_indices = @transform_15, window_bounds = array<i64: 32, 128>}, {pipeline_mode = #tpu.pipeline_mode<synchronous>, transform_indices = @transform_16, window_bounds = array<i64: 4, 128>}, {pipeline_mode = #tpu.pipeline_mode<synchronous>, transform_indices = @transform_17, window_bounds = array<i64: 128, 16>}, {pipeline_mode = #tpu.pipeline_mode<synchronous>, transform_indices = @transform_18, window_bounds = array<i64: 32, 32>}, {pipeline_mode = #tpu.pipeline_mode<synchronous>, transform_indices = @transform_19, window_bounds = array<i64: 32, 16>}]} {
    %c0 = arith.constant 0 : index
    %c0_0 = arith.constant 0 : index
    %0 = vector.load %arg1[%c0, %c0_0] : memref<32x32xf32, #tpu.memory_space<vmem>>, vector<32x32xf32>
    %c0_1 = arith.constant 0 : index
    %c0_2 = arith.constant 0 : index
    %1 = vector.load %arg2[%c0_1, %c0_2] : memref<1x32xf32, #tpu.memory_space<vmem>>, vector<1x32xf32>
    %c0_3 = arith.constant 0 : index
    %c0_4 = arith.constant 0 : index
    %2 = vector.load %arg3[%c0_3, %c0_4] : memref<1x32xf32, #tpu.memory_space<vmem>>, vector<1x32xf32>
    %cst = arith.constant dense<0.000000e+00> : vector<32xf32>
    %3 = vector.multi_reduction <add>, %0, %cst [1] : vector<32x32xf32> to vector<32xf32>
    %4 = vector.shape_cast %3 : vector<32xf32> to vector<32x1xf32>
    %cst_5 = arith.constant 3.200000e+01 : f32
    %5 = vector.broadcast %cst_5 : f32 to vector<32x1xf32>
    %6 = arith.divf %4, %5 : vector<32x1xf32>
    %7 = vector.broadcast %6 : vector<32x1xf32> to vector<32x32xf32>
    %8 = arith.subf %0, %7 : vector<32x32xf32>
    %9 = arith.mulf %8, %8 : vector<32x32xf32>
    %cst_6 = arith.constant dense<0.000000e+00> : vector<32xf32>
    %10 = vector.multi_reduction <add>, %9, %cst_6 [1] : vector<32x32xf32> to vector<32xf32>
    %11 = vector.shape_cast %10 : vector<32xf32> to vector<32x1xf32>
    %cst_7 = arith.constant 3.200000e+01 : f32
    %12 = vector.broadcast %cst_7 : f32 to vector<32x1xf32>
    %13 = arith.divf %11, %12 : vector<32x1xf32>
    %14 = vector.broadcast %6 : vector<32x1xf32> to vector<32x32xf32>
    %15 = arith.subf %0, %14 : vector<32x32xf32>
    %cst_8 = arith.constant 9.99999974E-6 : f32
    %16 = vector.broadcast %cst_8 : f32 to vector<32x1xf32>
    %17 = arith.addf %13, %16 : vector<32x1xf32>
    %18 = math.rsqrt %17 : vector<32x1xf32>
    %19 = vector.broadcast %18 : vector<32x1xf32> to vector<32x32xf32>
    %20 = arith.mulf %15, %19 : vector<32x32xf32>
    %21 = vector.broadcast %1 : vector<1x32xf32> to vector<32x32xf32>
    %22 = arith.mulf %20, %21 : vector<32x32xf32>
    %23 = vector.broadcast %2 : vector<1x32xf32> to vector<32x32xf32>
    %24 = arith.addf %22, %23 : vector<32x32xf32>
    %25 = arith.truncf %24 : vector<32x32xf32> to vector<32x32xbf16>
    %c0_9 = arith.constant 0 : index
    %c0_10 = arith.constant 0 : index
    %26 = vector.load %arg4[%c0_9, %c0_10] : memref<32x96xbf16, #tpu.memory_space<vmem>>, vector<32x96xbf16>
    %cst_11 = arith.constant dense<0.000000e+00> : vector<32x96xf32>
    %27 = tpu.matmul %25, %26, %cst_11 {dimension_numbers = #tpu.dot_dimension_numbers<[1], [0], [0], [1], [0, 0, 1, 1], [], []>} : vector<32x32xbf16>, vector<32x96xbf16>, vector<32x96xf32> -> vector<32x96xf32>
    %c0_12 = arith.constant 0 : index
    %c0_13 = arith.constant 0 : index
    %28 = vector.load %arg5[%c0_12, %c0_13] : memref<1x96xf32, #tpu.memory_space<vmem>>, vector<1x96xf32>
    %29 = vector.broadcast %28 : vector<1x96xf32> to vector<32x96xf32>
    %30 = arith.addf %27, %29 : vector<32x96xf32>
    %31 = vector.extract_strided_slice %30 {offsets = [0, 0], sizes = [32, 32], strides = [1, 1]} : vector<32x96xf32> to vector<32x32xf32>
    %32 = vector.extract_strided_slice %30 {offsets = [0, 32], sizes = [32, 32], strides = [1, 1]} : vector<32x96xf32> to vector<32x32xf32>
    %33 = vector.extract_strided_slice %30 {offsets = [0, 64], sizes = [32, 32], strides = [1, 1]} : vector<32x96xf32> to vector<32x32xf32>
    %c0_14 = arith.constant 0 : index
    %c0_15 = arith.constant 0 : index
    %34 = vector.load %arg15[%c0_14, %c0_15] : memref<128x32xf32, #tpu.memory_space<vmem>>, vector<128x32xf32>
    %c0_16 = arith.constant 0 : index
    %c0_17 = arith.constant 0 : index
    %35 = vector.load %arg14[%c0_16, %c0_17] : memref<128x32xf32, #tpu.memory_space<vmem>>, vector<128x32xf32>
    %cst_18 = arith.constant dense<0.000000e+00> : vector<128x32xf32>
    %36 = tpu.matmul %35, %32, %cst_18 {dimension_numbers = #tpu.dot_dimension_numbers<[1], [0], [0], [1], [0, 0, 1, 1], [], []>} : vector<128x32xf32>, vector<32x32xf32>, vector<128x32xf32> -> vector<128x32xf32>
    %37 = arith.mulf %36, %34 : vector<128x32xf32>
    %c0_19 = arith.constant 0 : index
    %c0_20 = arith.constant 0 : index
    %38 = vector.load %arg14[%c0_19, %c0_20] : memref<128x32xf32, #tpu.memory_space<vmem>>, vector<128x32xf32>
    %cst_21 = arith.constant dense<0.000000e+00> : vector<128x32xf32>
    %39 = tpu.matmul %38, %33, %cst_21 {dimension_numbers = #tpu.dot_dimension_numbers<[1], [0], [0], [1], [0, 0, 1, 1], [], []>} : vector<128x32xf32>, vector<32x32xf32>, vector<128x32xf32> -> vector<128x32xf32>
    %40 = arith.mulf %39, %34 : vector<128x32xf32>
    %41 = arith.truncf %31 : vector<32x32xf32> to vector<32x32xbf16>
    %42 = arith.truncf %37 : vector<128x32xf32> to vector<128x32xbf16>
    %cst_22 = arith.constant dense<0.000000e+00> : vector<32x128xf32>
    %43 = tpu.matmul %41, %42, %cst_22 {dimension_numbers = #tpu.dot_dimension_numbers<[1], [1], [0], [0], [0, 0, 1, 0], [], []>} : vector<32x32xbf16>, vector<128x32xbf16>, vector<32x128xf32> -> vector<32x128xf32>
    %c0_23 = arith.constant 0 : index
    %c0_24 = arith.constant 0 : index
    %44 = vector.load %arg16[%c0_23, %c0_24] : memref<32x128xf32, #tpu.memory_space<vmem>>, vector<32x128xf32>
    %45 = arith.addf %43, %44 : vector<32x128xf32>
    %c0_25 = arith.constant 0 : index
    %c0_26 = arith.constant 0 : index
    %46 = vector.load %arg17[%c0_25, %c0_26] : memref<4x128xf32, #tpu.memory_space<vmem>>, vector<4x128xf32>
    %47 = vector.extract_strided_slice %45 {offsets = [0, 0], sizes = [32, 32], strides = [1, 1]} : vector<32x128xf32> to vector<32x32xf32>
    %cst_27 = arith.constant dense<0xFF800000> : vector<32xf32>
    %48 = vector.multi_reduction <maximumf>, %47, %cst_27 [1] : vector<32x32xf32> to vector<32xf32>
    %49 = vector.shape_cast %48 : vector<32xf32> to vector<32x1xf32>
    %50 = vector.extract_strided_slice %46 {offsets = [0, 0], sizes = [1, 128], strides = [1, 1]} : vector<4x128xf32> to vector<1x128xf32>
    %51 = vector.broadcast %49 : vector<32x1xf32> to vector<32x128xf32>
    %52 = vector.broadcast %50 : vector<1x128xf32> to vector<32x128xf32>
    %53 = arith.mulf %51, %52 : vector<32x128xf32>
    %54 = vector.extract_strided_slice %45 {offsets = [0, 32], sizes = [32, 32], strides = [1, 1]} : vector<32x128xf32> to vector<32x32xf32>
    %cst_28 = arith.constant dense<0xFF800000> : vector<32xf32>
    %55 = vector.multi_reduction <maximumf>, %54, %cst_28 [1] : vector<32x32xf32> to vector<32xf32>
    %56 = vector.shape_cast %55 : vector<32xf32> to vector<32x1xf32>
    %57 = vector.extract_strided_slice %46 {offsets = [1, 0], sizes = [1, 128], strides = [1, 1]} : vector<4x128xf32> to vector<1x128xf32>
    %58 = vector.broadcast %56 : vector<32x1xf32> to vector<32x128xf32>
    %59 = vector.broadcast %57 : vector<1x128xf32> to vector<32x128xf32>
    %60 = arith.mulf %58, %59 : vector<32x128xf32>
    %61 = arith.addf %53, %60 : vector<32x128xf32>
    %62 = vector.extract_strided_slice %45 {offsets = [0, 64], sizes = [32, 32], strides = [1, 1]} : vector<32x128xf32> to vector<32x32xf32>
    %cst_29 = arith.constant dense<0xFF800000> : vector<32xf32>
    %63 = vector.multi_reduction <maximumf>, %62, %cst_29 [1] : vector<32x32xf32> to vector<32xf32>
    %64 = vector.shape_cast %63 : vector<32xf32> to vector<32x1xf32>
    %65 = vector.extract_strided_slice %46 {offsets = [2, 0], sizes = [1, 128], strides = [1, 1]} : vector<4x128xf32> to vector<1x128xf32>
    %66 = vector.broadcast %64 : vector<32x1xf32> to vector<32x128xf32>
    %67 = vector.broadcast %65 : vector<1x128xf32> to vector<32x128xf32>
    %68 = arith.mulf %66, %67 : vector<32x128xf32>
    %69 = arith.addf %61, %68 : vector<32x128xf32>
    %70 = vector.extract_strided_slice %45 {offsets = [0, 96], sizes = [32, 32], strides = [1, 1]} : vector<32x128xf32> to vector<32x32xf32>
    %cst_30 = arith.constant dense<0xFF800000> : vector<32xf32>
    %71 = vector.multi_reduction <maximumf>, %70, %cst_30 [1] : vector<32x32xf32> to vector<32xf32>
    %72 = vector.shape_cast %71 : vector<32xf32> to vector<32x1xf32>
    %73 = vector.extract_strided_slice %46 {offsets = [3, 0], sizes = [1, 128], strides = [1, 1]} : vector<4x128xf32> to vector<1x128xf32>
    %74 = vector.broadcast %72 : vector<32x1xf32> to vector<32x128xf32>
    %75 = vector.broadcast %73 : vector<1x128xf32> to vector<32x128xf32>
    %76 = arith.mulf %74, %75 : vector<32x128xf32>
    %77 = arith.addf %69, %76 : vector<32x128xf32>
    %78 = arith.subf %45, %77 : vector<32x128xf32>
    %79 = math.exp %78 : vector<32x128xf32>
    %cst_31 = arith.constant dense<0.000000e+00> : vector<32x4xf32>
    %80 = tpu.matmul %79, %46, %cst_31 {dimension_numbers = #tpu.dot_dimension_numbers<[1], [1], [0], [0], [0, 0, 1, 0], [], []>} : vector<32x128xf32>, vector<4x128xf32>, vector<32x4xf32> -> vector<32x4xf32>
    %81 = tpu.reciprocal %80 {approx = true} : vector<32x4xf32> -> vector<32x4xf32>
    %cst_32 = arith.constant dense<0.000000e+00> : vector<32x128xf32>
    %82 = tpu.matmul %81, %46, %cst_32 {dimension_numbers = #tpu.dot_dimension_numbers<[1], [0], [0], [1], [0, 0, 1, 1], [], []>} : vector<32x4xf32>, vector<4x128xf32>, vector<32x128xf32> -> vector<32x128xf32>
    %83 = arith.mulf %79, %82 : vector<32x128xf32>
    %c0_33 = arith.constant 0 : index
    %c0_34 = arith.constant 0 : index
    %84 = vector.load %arg18[%c0_33, %c0_34] : memref<128x16xf32, #tpu.memory_space<vmem>>, vector<128x16xf32>
    %cst_35 = arith.constant dense<0.000000e+00> : vector<32x16xf32>
    %85 = tpu.matmul %83, %84, %cst_35 {dimension_numbers = #tpu.dot_dimension_numbers<[1], [0], [0], [1], [0, 0, 1, 1], [], []>} : vector<32x128xf32>, vector<128x16xf32>, vector<32x16xf32> -> vector<32x16xf32>
    %c0_36 = arith.constant 0 : index
    %c0_37 = arith.constant 0 : index
    %86 = vector.load %arg20[%c0_36, %c0_37] : memref<32x16xf32, #tpu.memory_space<vmem>>, vector<32x16xf32>
    tpu.vector_store %arg20[%c0_36, %c0_37], %85 {strides = array<i32>} : memref<32x16xf32, #tpu.memory_space<vmem>>, vector<32x16xf32>,
    %87 = arith.truncf %83 : vector<32x128xf32> to vector<32x128xbf16>
    %88 = arith.truncf %40 : vector<128x32xf32> to vector<128x32xbf16>
    %cst_38 = arith.constant dense<0.000000e+00> : vector<32x32xf32>
    %89 = tpu.matmul %87, %88, %cst_38 {dimension_numbers = #tpu.dot_dimension_numbers<[1], [0], [0], [1], [0, 0, 1, 1], [], []>} : vector<32x128xbf16>, vector<128x32xbf16>, vector<32x32xf32> -> vector<32x32xf32>
    %90 = arith.truncf %89 : vector<32x32xf32> to vector<32x32xbf16>
    %c0_39 = arith.constant 0 : index
    %c0_40 = arith.constant 0 : index
    %91 = vector.load %arg6[%c0_39, %c0_40] : memref<32x32xbf16, #tpu.memory_space<vmem>>, vector<32x32xbf16>
    %cst_41 = arith.constant dense<0.000000e+00> : vector<32x32xf32>
    %92 = tpu.matmul %90, %91, %cst_41 {dimension_numbers = #tpu.dot_dimension_numbers<[1], [0], [0], [1], [0, 0, 1, 1], [], []>} : vector<32x32xbf16>, vector<32x32xbf16>, vector<32x32xf32> -> vector<32x32xf32>
    %c0_42 = arith.constant 0 : index
    %c0_43 = arith.constant 0 : index
    %93 = vector.load %arg7[%c0_42, %c0_43] : memref<1x32xf32, #tpu.memory_space<vmem>>, vector<1x32xf32>
    %94 = vector.broadcast %93 : vector<1x32xf32> to vector<32x32xf32>
    %95 = arith.addf %92, %94 : vector<32x32xf32>
    %96 = arith.addf %0, %95 : vector<32x32xf32>
    %c0_44 = arith.constant 0 : index
    %c0_45 = arith.constant 0 : index
    %97 = vector.load %arg8[%c0_44, %c0_45] : memref<1x32xf32, #tpu.memory_space<vmem>>, vector<1x32xf32>
    %c0_46 = arith.constant 0 : index
    %c0_47 = arith.constant 0 : index
    %98 = vector.load %arg9[%c0_46, %c0_47] : memref<1x32xf32, #tpu.memory_space<vmem>>, vector<1x32xf32>
    %cst_48 = arith.constant dense<0.000000e+00> : vector<32xf32>
    %99 = vector.multi_reduction <add>, %96, %cst_48 [1] : vector<32x32xf32> to vector<32xf32>
    %100 = vector.shape_cast %99 : vector<32xf32> to vector<32x1xf32>
    %cst_49 = arith.constant 3.200000e+01 : f32
    %101 = vector.broadcast %cst_49 : f32 to vector<32x1xf32>
    %102 = arith.divf %100, %101 : vector<32x1xf32>
    %103 = vector.broadcast %102 : vector<32x1xf32> to vector<32x32xf32>
    %104 = arith.subf %96, %103 : vector<32x32xf32>
    %105 = arith.mulf %104, %104 : vector<32x32xf32>
    %cst_50 = arith.constant dense<0.000000e+00> : vector<32xf32>
    %106 = vector.multi_reduction <add>, %105, %cst_50 [1] : vector<32x32xf32> to vector<32xf32>
    %107 = vector.shape_cast %106 : vector<32xf32> to vector<32x1xf32>
    %cst_51 = arith.constant 3.200000e+01 : f32
    %108 = vector.broadcast %cst_51 : f32 to vector<32x1xf32>
    %109 = arith.divf %107, %108 : vector<32x1xf32>
    %110 = vector.broadcast %102 : vector<32x1xf32> to vector<32x32xf32>
    %111 = arith.subf %96, %110 : vector<32x32xf32>
    %cst_52 = arith.constant 9.99999974E-6 : f32
    %112 = vector.broadcast %cst_52 : f32 to vector<32x1xf32>
    %113 = arith.addf %109, %112 : vector<32x1xf32>
    %114 = math.rsqrt %113 : vector<32x1xf32>
    %115 = vector.broadcast %114 : vector<32x1xf32> to vector<32x32xf32>
    %116 = arith.mulf %111, %115 : vector<32x32xf32>
    %117 = vector.broadcast %97 : vector<1x32xf32> to vector<32x32xf32>
    %118 = arith.mulf %116, %117 : vector<32x32xf32>
    %119 = vector.broadcast %98 : vector<1x32xf32> to vector<32x32xf32>
    %120 = arith.addf %118, %119 : vector<32x32xf32>
    %121 = arith.truncf %120 : vector<32x32xf32> to vector<32x32xbf16>
    %c0_53 = arith.constant 0 : index
    %c0_54 = arith.constant 0 : index
    %122 = vector.load %arg10[%c0_53, %c0_54] : memref<32x128xbf16, #tpu.memory_space<vmem>>, vector<32x128xbf16>
    %cst_55 = arith.constant dense<0.000000e+00> : vector<32x128xf32>
    %123 = tpu.matmul %121, %122, %cst_55 {dimension_numbers = #tpu.dot_dimension_numbers<[1], [0], [0], [1], [0, 0, 1, 1], [], []>} : vector<32x32xbf16>, vector<32x128xbf16>, vector<32x128xf32> -> vector<32x128xf32>
    %c0_56 = arith.constant 0 : index
    %c0_57 = arith.constant 0 : index
    %124 = vector.load %arg11[%c0_56, %c0_57] : memref<1x128xf32, #tpu.memory_space<vmem>>, vector<1x128xf32>
    %125 = vector.broadcast %124 : vector<1x128xf32> to vector<32x128xf32>
    %126 = arith.addf %123, %125 : vector<32x128xf32>
    %cst_58 = arith.constant 5.000000e-01 : f32
    %127 = vector.broadcast %cst_58 : f32 to vector<32x128xf32>
    %128 = arith.mulf %127, %126 : vector<32x128xf32>
    %cst_59 = arith.constant 0.707106769 : f32
    %129 = vector.broadcast %cst_59 : f32 to vector<32x128xf32>
    %130 = arith.mulf %126, %129 : vector<32x128xf32>
    %131 = math.erf %130 : vector<32x128xf32>
    %cst_60 = arith.constant 1.000000e+00 : f32
    %132 = vector.broadcast %cst_60 : f32 to vector<32x128xf32>
    %133 = arith.addf %132, %131 : vector<32x128xf32>
    %134 = arith.mulf %128, %133 : vector<32x128xf32>
    %135 = arith.truncf %134 : vector<32x128xf32> to vector<32x128xbf16>
    %c0_61 = arith.constant 0 : index
    %c0_62 = arith.constant 0 : index
    %136 = vector.load %arg12[%c0_61, %c0_62] : memref<128x32xbf16, #tpu.memory_space<vmem>>, vector<128x32xbf16>
    %cst_63 = arith.constant dense<0.000000e+00> : vector<32x32xf32>
    %137 = tpu.matmul %135, %136, %cst_63 {dimension_numbers = #tpu.dot_dimension_numbers<[1], [0], [0], [1], [0, 0, 1, 1], [], []>} : vector<32x128xbf16>, vector<128x32xbf16>, vector<32x32xf32> -> vector<32x32xf32>
    %c0_64 = arith.constant 0 : index
    %c0_65 = arith.constant 0 : index
    %138 = vector.load %arg13[%c0_64, %c0_65] : memref<1x32xf32, #tpu.memory_space<vmem>>, vector<1x32xf32>
    %139 = vector.broadcast %138 : vector<1x32xf32> to vector<32x32xf32>
    %140 = arith.addf %137, %139 : vector<32x32xf32>
    %141 = arith.addf %96, %140 : vector<32x32xf32>
    %c0_66 = arith.constant 0 : index
    %c0_67 = arith.constant 0 : index
    %142 = vector.load %arg19[%c0_66, %c0_67] : memref<32x32xf32, #tpu.memory_space<vmem>>, vector<32x32xf32>
    tpu.vector_store %arg19[%c0_66, %c0_67], %141 {strides = array<i32>} : memref<32x32xf32, #tpu.memory_space<vmem>>, vector<32x32xf32>,
    return
  }
  func.func @transform_0(%arg0: i32) -> (i32, i32) {
    %c0_i32 = arith.constant 0 : i32
    %c0_i32_0 = arith.constant 0 : i32
    %c0_i32_1 = arith.constant 0 : i32
    return %c0_i32, %c0_i32_0 : i32, i32
  }
  func.func @transform_1(%arg0: i32) -> (i32, i32) {
    %c0_i32 = arith.constant 0 : i32
    %c0_i32_0 = arith.constant 0 : i32
    %c0_i32_1 = arith.constant 0 : i32
    return %c0_i32, %c0_i32_0 : i32, i32
  }
  func.func @transform_2(%arg0: i32) -> (i32, i32) {
    %c0_i32 = arith.constant 0 : i32
    %c0_i32_0 = arith.constant 0 : i32
    %c0_i32_1 = arith.constant 0 : i32
    return %c0_i32, %c0_i32_0 : i32, i32
  }
  func.func @transform_3(%arg0: i32) -> (i32, i32) {
    %c0_i32 = arith.constant 0 : i32
    %c0_i32_0 = arith.constant 0 : i32
    %c0_i32_1 = arith.constant 0 : i32
    return %c0_i32, %c0_i32_0 : i32, i32
  }
  func.func @transform_4(%arg0: i32) -> (i32, i32) {
    %c0_i32 = arith.constant 0 : i32
    %c0_i32_0 = arith.constant 0 : i32
    %c0_i32_1 = arith.constant 0 : i32
    return %c0_i32, %c0_i32_0 : i32, i32
  }
  func.func @transform_5(%arg0: i32) -> (i32, i32) {
    %c0_i32 = arith.constant 0 : i32
    %c0_i32_0 = arith.constant 0 : i32
    %c0_i32_1 = arith.constant 0 : i32
    return %c0_i32, %c0_i32_0 : i32, i32
  }
  func.func @transform_6(%arg0: i32) -> (i32, i32) {
    %c0_i32 = arith.constant 0 : i32
    %c0_i32_0 = arith.constant 0 : i32
    %c0_i32_1 = arith.constant 0 : i32
    return %c0_i32, %c0_i32_0 : i32, i32
  }
  func.func @transform_7(%arg0: i32) -> (i32, i32) {
    %c0_i32 = arith.constant 0 : i32
    %c0_i32_0 = arith.constant 0 : i32
    %c0_i32_1 = arith.constant 0 : i32
    return %c0_i32, %c0_i32_0 : i32, i32
  }
  func.func @transform_8(%arg0: i32) -> (i32, i32) {
    %c0_i32 = arith.constant 0 : i32
    %c0_i32_0 = arith.constant 0 : i32
    %c0_i32_1 = arith.constant 0 : i32
    return %c0_i32, %c0_i32_0 : i32, i32
  }
  func.func @transform_9(%arg0: i32) -> (i32, i32) {
    %c0_i32 = arith.constant 0 : i32
    %c0_i32_0 = arith.constant 0 : i32
    %c0_i32_1 = arith.constant 0 : i32
    return %c0_i32, %c0_i32_0 : i32, i32
  }
  func.func @transform_10(%arg0: i32) -> (i32, i32) {
    %c0_i32 = arith.constant 0 : i32
    %c0_i32_0 = arith.constant 0 : i32
    %c0_i32_1 = arith.constant 0 : i32
    return %c0_i32, %c0_i32_0 : i32, i32
  }
  func.func @transform_11(%arg0: i32) -> (i32, i32) {
    %c0_i32 = arith.constant 0 : i32
    %c0_i32_0 = arith.constant 0 : i32
    %c0_i32_1 = arith.constant 0 : i32
    return %c0_i32, %c0_i32_0 : i32, i32
  }
  func.func @transform_12(%arg0: i32) -> (i32, i32) {
    %c0_i32 = arith.constant 0 : i32
    %c0_i32_0 = arith.constant 0 : i32
    %c0_i32_1 = arith.constant 0 : i32
    return %c0_i32, %c0_i32_0 : i32, i32
  }
  func.func @transform_13(%arg0: i32) -> (i32, i32) {
    %c0_i32 = arith.constant 0 : i32
    %c0_i32_0 = arith.constant 0 : i32
    %c0_i32_1 = arith.constant 0 : i32
    return %c0_i32, %c0_i32_0 : i32, i32
  }
  func.func @transform_14(%arg0: i32) -> (i32, i32) {
    %c0_i32 = arith.constant 0 : i32
    %c0_i32_0 = arith.constant 0 : i32
    %c0_i32_1 = arith.constant 0 : i32
    return %c0_i32, %c0_i32_0 : i32, i32
  }
  func.func @transform_15(%arg0: i32) -> (i32, i32) {
    %c0_i32 = arith.constant 0 : i32
    %c0_i32_0 = arith.constant 0 : i32
    %c0_i32_1 = arith.constant 0 : i32
    return %c0_i32, %c0_i32_0 : i32, i32
  }
  func.func @transform_16(%arg0: i32) -> (i32, i32) {
    %c0_i32 = arith.constant 0 : i32
    %c0_i32_0 = arith.constant 0 : i32
    %c0_i32_1 = arith.constant 0 : i32
    return %c0_i32, %c0_i32_0 : i32, i32
  }
  func.func @transform_17(%arg0: i32) -> (i32, i32) {
    %c0_i32 = arith.constant 0 : i32
    %c0_i32_0 = arith.constant 0 : i32
    %c0_i32_1 = arith.constant 0 : i32
    return %c0_i32, %c0_i32_0 : i32, i32
  }
  func.func @transform_18(%arg0: i32) -> (i32, i32) {
    %c0_i32 = arith.constant 0 : i32
    %c0_i32_0 = arith.constant 0 : i32
    %c0_i32_1 = arith.constant 0 : i32
    return %c0_i32, %c0_i32_0 : i32, i32
  }
  func.func @transform_19(%arg0: i32) -> (i32, i32) {
    %c0_i32 = arith.constant 0 : i32
    %c0_i32_0 = arith.constant 0 : i32
    %c0_i32_1 = arith.constant 0 : i32
    return %c0_i32, %c0_i32_0 : i32, i32
  }
}

</mosaic_0001>

<llo_original>
// kernel: block_forward.1
$region0: #{block_forward.1}
  #allocation0 [shape = 'u32[]', space=smem, size = 0x4, offset = 0x4, fixed_abs, tag = 'smem constant byte address 0x4 - core index']
  #allocation1 [shape = 'u32[144,128]{1,0:T(1,128)}', space=vmem, size = 0x12000, scoped, tag = 'internal scratch']
  %s0 = inlined_call_operand.vmem [shape: f32[32,32], index: 0, kind: input, shape index: {}]
  %s1 = inlined_call_operand.vmem [shape: f32[1,32], index: 1, kind: input, shape index: {}]
  %s2 = inlined_call_operand.hbm [shape: f32[1,32], index: 2, kind: input, shape index: {}]
  %s3 = inlined_call_operand.vmem [shape: bf16[32,96], index: 3, kind: input, shape index: {}]
  %s4 = inlined_call_operand.hbm [shape: f32[1,96], index: 4, kind: input, shape index: {}]
  %s5 = inlined_call_operand.hbm [shape: bf16[32,32], index: 5, kind: input, shape index: {}]
  %s6 = inlined_call_operand.hbm [shape: f32[1,32], index: 6, kind: input, shape index: {}]
  %s7 = inlined_call_operand.hbm [shape: f32[1,32], index: 7, kind: input, shape index: {}]
  %s8 = inlined_call_operand.hbm [shape: f32[1,32], index: 8, kind: input, shape index: {}]
  %s9 = inlined_call_operand.hbm [shape: bf16[32,128], index: 9, kind: input, shape index: {}]
  %s10 = inlined_call_operand.hbm [shape: f32[1,128], index: 10, kind: input, shape index: {}]
  %s11 = inlined_call_operand.vmem [shape: bf16[128,32], index: 11, kind: input, shape index: {}]
  %s12 = inlined_call_operand.vmem [shape: f32[1,32], index: 12, kind: input, shape index: {}]
  %s13 = inlined_call_operand.hbm [shape: f32[128,32], index: 13, kind: input, shape index: {}]
  %s14 = inlined_call_operand.hbm [shape: f32[128,32], index: 14, kind: input, shape index: {}]
  %s15 = inlined_call_operand.vmem [shape: f32[32,128], index: 15, kind: input, shape index: {}]
  %s16 = inlined_call_operand.vmem [shape: f32[4,128], index: 16, kind: input, shape index: {}]
  %s17 = inlined_call_operand.hbm [shape: f32[128,16], index: 17, kind: input, shape index: {}]
  %s18 = inlined_call_operand.hbm [shape: f32[32,32], index: 18, kind: output, shape index: {0}]
  %s19 = inlined_call_operand.hbm [shape: f32[32,16], index: 19, kind: output, shape index: {1}]
  %20 = xla_tuple %s18, %s19
  %s21 = sld [smem:[#allocation0]]
  $region134: #{block_forward.1} parent=0
    _
  %s23 = ssub.s32 1, %s21
  %s24 = scalar_select 0, %s23, %s21
  $region1: #{block_forward.1} parent=0
    #allocation2 [shape = 'u8[512]{0}', space=vmem, size = 0x400, scoped, tag = 'input window, operand 2, single buffered']
    #allocation3 [shape = 's32[1]{0}', space=sflag, size = 0x4, scoped, tag = 'scoped memory for block_forward.1']
    #allocation4 [shape = 's32[1]{0}', space=sflag, size = 0x4, scoped, tag = 'scoped memory for block_forward.1']
    #allocation5 [shape = 'u8[512]{0}', space=vmem, size = 0x400, scoped, tag = 'input window, operand 4, single buffered']
    #allocation6 [shape = 's32[1]{0}', space=sflag, size = 0x4, scoped, tag = 'scoped memory for block_forward.1']
    #allocation7 [shape = 'u8[8192]{0}', space=vmem, size = 0x2000, scoped, tag = 'input window, operand 5, single buffered']
    #allocation8 [shape = 'u8[512]{0}', space=vmem, size = 0x400, scoped, tag = 'input window, operand 6, single buffered']
    #allocation9 [shape = 's32[1]{0}', space=sflag, size = 0x4, scoped, tag = 'scoped memory for block_forward.1']
    #allocation10 [shape = 'u8[512]{0}', space=vmem, size = 0x400, scoped, tag = 'input window, operand 7, single buffered']
    #allocation11 [shape = 'u8[512]{0}', space=vmem, size = 0x400, scoped, tag = 'input window, operand 8, single buffered']
    #allocation12 [shape = 's32[1]{0}', space=sflag, size = 0x4, scoped, tag = 'scoped memory for block_forward.1']
    #allocation13 [shape = 'u8[8192]{0}', space=vmem, size = 0x2000, scoped, tag = 'input window, operand 9, single buffered']
    #allocation14 [shape = 'u8[512]{0}', space=vmem, size = 0x400, scoped, tag = 'input window, operand 10, single buffered']
    #allocation15 [shape = 's32[1]{0}', space=sflag, size = 0x4, scoped, tag = 'scoped memory for block_forward.1']
    #allocation16 [shape = 'u8[65536]{0}', space=vmem, size = 0x10000, scoped, tag = 'input window, operand 13, single buffered']
    #allocation17 [shape = 'u8[65536]{0}', space=vmem, size = 0x10000, scoped, tag = 'input window, operand 14, single buffered']
    #allocation18 [shape = 's32[1]{0}', space=sflag, size = 0x4, scoped, tag = 'scoped memory for block_forward.1']
    #allocation19 [shape = 'u8[65536]{0}', space=vmem, size = 0x10000, scoped, tag = 'input window, operand 17, single buffered']
    #allocation20 [shape = 'u8[16384]{0}', space=vmem, size = 0x4000, scoped, tag = 'output window, operand 0, single buffered']
    #allocation21 [shape = 'u8[16384]{0}', space=vmem, size = 0x4000, scoped, tag = 'output window, operand 1, single buffered']
    #allocation22 [shape = 's32[1]{0}', space=sflag, size = 0x4, scoped, tag = 'scoped memory for block_forward.1']
    %25 = vsyncpa [#allocation3], 0
    %26 = vsyncpa [#allocation6], 0
    %27 = vsyncpa [#allocation9], 0
    %28 = vsyncpa [#allocation12], 0
    %29 = vsyncpa [#allocation15], 0
    %30 = vsyncpa [#allocation18], 0
    %31 = vsyncpa [#allocation4], 0
    %32 = vsyncpa [#allocation22], 0
    // Predicated region
    $region2: #{block_forward.1} parent=1 // pred_check
      _
    $region3: #{block_forward.1} parent=1 // pred_check_branch
      %34 = sbr.rel (0) target = $region5
    $region4: #{block_forward.1} parent=1 // pred_region
      _
    $region5: #{block_forward.1} parent=1 // pred_fallthru
      _
    // Predicated region
    $region6: #{block_forward.1} parent=1 // pred_check
      _
    $region7: #{block_forward.1} parent=1 // pred_check_branch
      %36 = sbr.rel (0) target = $region9
    $region8: #{block_forward.1} parent=1 // pred_region
      _
    $region9: #{block_forward.1} parent=1 // pred_fallthru
      _
    // Predicated region
    $region10: #{block_forward.1} parent=1 // pred_check
      _
    $region11: #{block_forward.1} parent=1 // pred_check_branch
      %38 = sbr.rel (0) target = $region13
    $region12: #{block_forward.1} parent=1 // pred_region
      %s40 = ssub.s32 16, 16
      %41 = vsyncadd [#allocation3], %s40
      %s43 = sshll.u32 [#allocation2], 4
      %s44 = int_to_ptr.vmem [resolvable:$true] %s43
      %46 = dma.hbm_to_vmem [thread:$0]  %s2, 16, %s44, [#allocation3]
    $region13: #{block_forward.1} parent=1 // pred_fallthru
      _
    // Predicated region
    $region14: #{block_forward.1} parent=1 // pred_check
      _
    $region15: #{block_forward.1} parent=1 // pred_check_branch
      %48 = sbr.rel (0) target = $region17
    $region16: #{block_forward.1} parent=1 // pred_region
      _
    $region17: #{block_forward.1} parent=1 // pred_fallthru
      _
    // Predicated region
    $region18: #{block_forward.1} parent=1 // pred_check
      _
    $region19: #{block_forward.1} parent=1 // pred_check_branch
      %50 = sbr.rel (0) target = $region21
    $region20: #{block_forward.1} parent=1 // pred_region
      %s52 = ssub.s32 16, 16
      %53 = vsyncadd [#allocation6], %s52
      %s55 = sshll.u32 [#allocation5], 4
      %s56 = int_to_ptr.vmem [resolvable:$true] %s55
      %58 = dma.hbm_to_vmem [thread:$0]  %s4, 16, %s56, [#allocation6]
    $region21: #{block_forward.1} parent=1 // pred_fallthru
      _
    // Predicated region
    $region22: #{block_forward.1} parent=1 // pred_check
      _
    $region23: #{block_forward.1} parent=1 // pred_check_branch
      %60 = sbr.rel (0) target = $region25
    $region24: #{block_forward.1} parent=1 // pred_region
      %s62 = ssub.s32 256, 256
      %63 = vsyncadd [#allocation6], %s62
      %s64 = sshll.u32 [#allocation7], 4
      %s65 = int_to_ptr.vmem [resolvable:$true] %s64
      %70 = dma.hbm_to_vmem [thread:$0]  %s5, 256, %s65, [#allocation6], 64, 64, 4
    $region25: #{block_forward.1} parent=1 // pred_fallthru
      _
    // Predicated region
    $region26: #{block_forward.1} parent=1 // pred_check
      _
    $region27: #{block_forward.1} parent=1 // pred_check_branch
      %72 = sbr.rel (0) target = $region29
    $region28: #{block_forward.1} parent=1 // pred_region
      %s74 = ssub.s32 16, 16
      %75 = vsyncadd [#allocation9], %s74
      %s77 = sshll.u32 [#allocation8], 4
      %s78 = int_to_ptr.vmem [resolvable:$true] %s77
      %80 = dma.hbm_to_vmem [thread:$0]  %s6, 16, %s78, [#allocation9]
    $region29: #{block_forward.1} parent=1 // pred_fallthru
      _
    // Predicated region
    $region30: #{block_forward.1} parent=1 // pred_check
      _
    $region31: #{block_forward.1} parent=1 // pred_check_branch
      %82 = sbr.rel (0) target = $region33
    $region32: #{block_forward.1} parent=1 // pred_region
      %s84 = ssub.s32 16, 16
      %85 = vsyncadd [#allocation9], %s84
      %s87 = sshll.u32 [#allocation10], 4
      %s88 = int_to_ptr.vmem [resolvable:$true] %s87
      %90 = dma.hbm_to_vmem [thread:$0]  %s7, 16, %s88, [#allocation9]
    $region33: #{block_forward.1} parent=1 // pred_fallthru
      _
    // Predicated region
    $region34: #{block_forward.1} parent=1 // pred_check
      _
    $region35: #{block_forward.1} parent=1 // pred_check_branch
      %92 = sbr.rel (0) target = $region37
    $region36: #{block_forward.1} parent=1 // pred_region
      %s94 = ssub.s32 16, 16
      %95 = vsyncadd [#allocation12], %s94
      %s97 = sshll.u32 [#allocation11], 4
      %s98 = int_to_ptr.vmem [resolvable:$true] %s97
      %100 = dma.hbm_to_vmem [thread:$0]  %s8, 16, %s98, [#allocation12]
    $region37: #{block_forward.1} parent=1 // pred_fallthru
      _
    // Predicated region
    $region38: #{block_forward.1} parent=1 // pred_check
      _
    $region39: #{block_forward.1} parent=1 // pred_check_branch
      %102 = sbr.rel (0) target = $region41
    $region40: #{block_forward.1} parent=1 // pred_region
      %s104 = ssub.s32 256, 256
      %105 = vsyncadd [#allocation12], %s104
      %s106 = sshll.u32 [#allocation13], 4
      %s107 = int_to_ptr.vmem [resolvable:$true] %s106
      %112 = dma.hbm_to_vmem [thread:$0]  %s9, 256, %s107, [#allocation12], 64, 64, 4
    $region41: #{block_forward.1} parent=1 // pred_fallthru
      _
    // Predicated region
    $region42: #{block_forward.1} parent=1 // pred_check
      _
    $region43: #{block_forward.1} parent=1 // pred_check_branch
      %114 = sbr.rel (0) target = $region45
    $region44: #{block_forward.1} parent=1 // pred_region
      %s116 = ssub.s32 16, 16
      %117 = vsyncadd [#allocation15], %s116
      %s119 = sshll.u32 [#allocation14], 4
      %s120 = int_to_ptr.vmem [resolvable:$true] %s119
      %122 = dma.hbm_to_vmem [thread:$0]  %s10, 16, %s120, [#allocation15]
    $region45: #{block_forward.1} parent=1 // pred_fallthru
      _
    // Predicated region
    $region46: #{block_forward.1} parent=1 // pred_check
      _
    $region47: #{block_forward.1} parent=1 // pred_check_branch
      %124 = sbr.rel (0) target = $region49
    $region48: #{block_forward.1} parent=1 // pred_region
      _
    $region49: #{block_forward.1} parent=1 // pred_fallthru
      _
    // Predicated region
    $region50: #{block_forward.1} parent=1 // pred_check
      _
    $region51: #{block_forward.1} parent=1 // pred_check_branch
      %126 = sbr.rel (0) target = $region53
    $region52: #{block_forward.1} parent=1 // pred_region
      _
    $region53: #{block_forward.1} parent=1 // pred_fallthru
      _
    // Predicated region
    $region54: #{block_forward.1} parent=1 // pred_check
      _
    $region55: #{block_forward.1} parent=1 // pred_check_branch
      %128 = sbr.rel (0) target = $region57
    $region56: #{block_forward.1} parent=1 // pred_region
      %s130 = ssub.s32 2048, 2048
      %131 = vsyncadd [#allocation15], %s130
      %s132 = sshll.u32 [#allocation16], 4
      %s133 = int_to_ptr.vmem [resolvable:$true] %s132
      %138 = dma.hbm_to_vmem [thread:$0]  %s13, 2048, %s133, [#allocation15], 128, 128, 8
    $region57: #{block_forward.1} parent=1 // pred_fallthru
      _
    // Predicated region
    $region58: #{block_forward.1} parent=1 // pred_check
      _
    $region59: #{block_forward.1} parent=1 // pred_check_branch
      %140 = sbr.rel (0) target = $region61
    $region60: #{block_forward.1} parent=1 // pred_region
      %s142 = ssub.s32 2048, 2048
      %143 = vsyncadd [#allocation18], %s142
      %s144 = sshll.u32 [#allocation17], 4
      %s145 = int_to_ptr.vmem [resolvable:$true] %s144
      %150 = dma.hbm_to_vmem [thread:$0]  %s14, 2048, %s145, [#allocation18], 128, 128, 8
    $region61: #{block_forward.1} parent=1 // pred_fallthru
      _
    // Predicated region
    $region62: #{block_forward.1} parent=1 // pred_check
      _
    $region63: #{block_forward.1} parent=1 // pred_check_branch
      %152 = sbr.rel (0) target = $region65
    $region64: #{block_forward.1} parent=1 // pred_region
      _
    $region65: #{block_forward.1} parent=1 // pred_fallthru
      _
    // Predicated region
    $region66: #{block_forward.1} parent=1 // pred_check
      _
    $region67: #{block_forward.1} parent=1 // pred_check_branch
      %154 = sbr.rel (0) target = $region69
    $region68: #{block_forward.1} parent=1 // pred_region
      _
    $region69: #{block_forward.1} parent=1 // pred_fallthru
      _
    // Predicated region
    $region70: #{block_forward.1} parent=1 // pred_check
      _
    $region71: #{block_forward.1} parent=1 // pred_check_branch
      %156 = sbr.rel (0) target = $region73
    $region72: #{block_forward.1} parent=1 // pred_region
      %s158 = ssub.s32 2048, 2048
      %159 = vsyncadd [#allocation18], %s158
      %s160 = sshll.u32 [#allocation19], 4
      %s161 = int_to_ptr.vmem [resolvable:$true] %s160
      %166 = dma.hbm_to_vmem [thread:$0]  %s17, 2048, %s161, [#allocation18], 128, 128, 8
    $region73: #{block_forward.1} parent=1 // pred_fallthru
      _
    // Predicated region
    $region74: #{block_forward.1} parent=1 // pred_check
      _
    $region75: #{block_forward.1} parent=1 // pred_check_branch
      %168 = sbr.rel (0) target = $region77
    $region76: #{block_forward.1} parent=1 // pred_region
      %169 = dma.done [#allocation3], 16
    $region77: #{block_forward.1} parent=1 // pred_fallthru
      _
    // Predicated region
    $region78: #{block_forward.1} parent=1 // pred_check
      _
    $region79: #{block_forward.1} parent=1 // pred_check_branch
      %171 = sbr.rel (0) target = $region81
    $region80: #{block_forward.1} parent=1 // pred_region
      %172 = dma.done [#allocation6], 16
    $region81: #{block_forward.1} parent=1 // pred_fallthru
      _
    // Predicated region
    $region82: #{block_forward.1} parent=1 // pred_check
      _
    $region83: #{block_forward.1} parent=1 // pred_check_branch
      %174 = sbr.rel (0) target = $region85
    $region84: #{block_forward.1} parent=1 // pred_region
      %175 = dma.done [#allocation6], 256
    $region85: #{block_forward.1} parent=1 // pred_fallthru
      _
    // Predicated region
    $region86: #{block_forward.1} parent=1 // pred_check
      _
    $region87: #{block_forward.1} parent=1 // pred_check_branch
      %177 = sbr.rel (0) target = $region89
    $region88: #{block_forward.1} parent=1 // pred_region
      %178 = dma.done [#allocation9], 16
    $region89: #{block_forward.1} parent=1 // pred_fallthru
      _
    // Predicated region
    $region90: #{block_forward.1} parent=1 // pred_check
      _
    $region91: #{block_forward.1} parent=1 // pred_check_branch
      %180 = sbr.rel (0) target = $region93
    $region92: #{block_forward.1} parent=1 // pred_region
      %181 = dma.done [#allocation9], 16
    $region93: #{block_forward.1} parent=1 // pred_fallthru
      _
    // Predicated region
    $region94: #{block_forward.1} parent=1 // pred_check
      _
    $region95: #{block_forward.1} parent=1 // pred_check_branch
      %183 = sbr.rel (0) target = $region97
    $region96: #{block_forward.1} parent=1 // pred_region
      %184 = dma.done [#allocation12], 16
    $region97: #{block_forward.1} parent=1 // pred_fallthru
      _
    // Predicated region
    $region98: #{block_forward.1} parent=1 // pred_check
      _
    $region99: #{block_forward.1} parent=1 // pred_check_branch
      %186 = sbr.rel (0) target = $region101
    $region100: #{block_forward.1} parent=1 // pred_region
      %187 = dma.done [#allocation12], 256
    $region101: #{block_forward.1} parent=1 // pred_fallthru
      _
    // Predicated region
    $region102: #{block_forward.1} parent=1 // pred_check
      _
    $region103: #{block_forward.1} parent=1 // pred_check_branch
      %189 = sbr.rel (0) target = $region105
    $region104: #{block_forward.1} parent=1 // pred_region
      %190 = dma.done [#allocation15], 16
    $region105: #{block_forward.1} parent=1 // pred_fallthru
      _
    // Predicated region
    $region106: #{block_forward.1} parent=1 // pred_check
      _
    $region107: #{block_forward.1} parent=1 // pred_check_branch
      %192 = sbr.rel (0) target = $region109
    $region108: #{block_forward.1} parent=1 // pred_region
      %193 = dma.done [#allocation15], 2048
    $region109: #{block_forward.1} parent=1 // pred_fallthru
      _
    // Predicated region
    $region110: #{block_forward.1} parent=1 // pred_check
      _
    $region111: #{block_forward.1} parent=1 // pred_check_branch
      %195 = sbr.rel (0) target = $region113
    $region112: #{block_forward.1} parent=1 // pred_region
      %196 = dma.done [#allocation18], 2048
    $region113: #{block_forward.1} parent=1 // pred_fallthru
      _
    // Predicated region
    $region114: #{block_forward.1} parent=1 // pred_check
      _
    $region115: #{block_forward.1} parent=1 // pred_check_branch
      %198 = sbr.rel (0) target = $region117
    $region116: #{block_forward.1} parent=1 // pred_region
      %199 = dma.done [#allocation18], 2048
    $region117: #{block_forward.1} parent=1 // pred_fallthru
      _
    %v201 = vld [vmem:[%s0] sm:$0xff]
    %v202 = vld [vmem:[%s0 + $0x8] sm:$0xff]
    %v203 = vld [vmem:[%s0 + $0x10] sm:$0xff]
    %v204 = vld [vmem:[%s0 + $0x18] sm:$0xff]
    %v205 = vld [vmem:[%s1] sm:$0x1]
    %v206 = vld [vmem:[#allocation2] sm:$0x1]
    %vm207 = vcmask 261120
    %v208 = vsel %vm207, %v201, 0.0
    %209 = vadd.xlane.f32.xlu0 %v208
    %v210 = vpop.xlane.xlu0 %209
    %v211 = vsel %vm207, %v202, 0.0
    %212 = vadd.xlane.f32.xlu0 %v211
    %v213 = vpop.xlane.xlu0 %212
    %v214 = vsel %vm207, %v203, 0.0
    %215 = vadd.xlane.f32.xlu0 %v214
    %v216 = vpop.xlane.xlu0 %215
    %v217 = vsel %vm207, %v204, 0.0
    %218 = vadd.xlane.f32.xlu0 %v217
    %v219 = vpop.xlane.xlu0 %218
    %v220 = vrcp.pop 32.0
    %v221 = vmul.f32 %v210, %v220
    %v222 = vmul.f32 %v213, %v220
    %v223 = vmul.f32 %v216, %v220
    %v224 = vmul.f32 %v219, %v220
    %v225 = vsub.f32 %v201, %v221
    %v226 = vsub.f32 %v202, %v222
    %v227 = vsub.f32 %v203, %v223
    %v228 = vsub.f32 %v204, %v224
    %v229 = vmul.f32 %v225, %v225
    %v230 = vmul.f32 %v226, %v226
    %v231 = vmul.f32 %v227, %v227
    %v232 = vmul.f32 %v228, %v228
    %v233 = vsel %vm207, %v229, 0.0
    %234 = vadd.xlane.f32.xlu0 %v233
    %v235 = vpop.xlane.xlu0 %234
    %v236 = vsel %vm207, %v230, 0.0
    %237 = vadd.xlane.f32.xlu0 %v236
    %v238 = vpop.xlane.xlu0 %237
    %v239 = vsel %vm207, %v231, 0.0
    %240 = vadd.xlane.f32.xlu0 %v239
    %v241 = vpop.xlane.xlu0 %240
    %v242 = vsel %vm207, %v232, 0.0
    %243 = vadd.xlane.f32.xlu0 %v242
    %v244 = vpop.xlane.xlu0 %243
    %v245 = vmul.f32 %v235, %v220
    %v246 = vmul.f32 %v238, %v220
    %v247 = vmul.f32 %v241, %v220
    %v248 = vmul.f32 %v244, %v220
    %v249 = vadd.f32 %v245, 1e-05
    %v250 = vadd.f32 %v246, 1e-05
    %v251 = vadd.f32 %v247, 1e-05
    %v252 = vadd.f32 %v248, 1e-05
    %v253 = vrsqrt.pop %v249
    %v254 = vrsqrt.pop %v250
    %v255 = vrsqrt.pop %v251
    %v256 = vrsqrt.pop %v252
    %v257 = vmul.f32 %v225, %v253
    %v258 = vmul.f32 %v226, %v254
    %v259 = vmul.f32 %v227, %v255
    %v260 = vmul.f32 %v228, %v256
    %v262 = vlaneseq
    %v263 = vshrl.u32 %v262, 7
    %v264 = vsub.s32 0, %v263
    %v265 = vrot.slane %v205, %v264
    %v267 = vmul.f32 %v257, %v265
    %v268 = vmul.f32 %v258, %v265
    %v269 = vmul.f32 %v259, %v265
    %v270 = vmul.f32 %v260, %v265
    %v272 = vlaneseq
    %v273 = vshrl.u32 %v272, 7
    %v274 = vsub.s32 0, %v273
    %v275 = vrot.slane %v206, %v274
    %v277 = vadd.f32 %v267, %v275
    %v278 = vadd.f32 %v268, %v275
    %v279 = vadd.f32 %v269, %v275
    %v280 = vadd.f32 %v270, %v275
    %v281 = vpack.c.bf16 %v278, %v277
    %v282 = vpack.c.bf16 %v280, %v279
    %v283 = vld [vmem:[%s3] sm:$0xf]
    %v284 = vld [vmem:[%s3 + $0x4] sm:$0xf]
    %v285 = vld [vmem:[%s3 + $0x8] sm:$0xf]
    %v286 = vld [vmem:[%s3 + $0xc] sm:$0xf]
    %v287 = vld [vmem:[#allocation5] sm:$0x1]
    %v289 = vlaneseq
    %v290 = vshrl.u32 %v289, 7
    %v291 = vsub.s32 0, %v290
    %v292 = vrot.slane %v287, %v291
    %v298 = vunpack.c.l.b16 %v283
    %v299 = vunpack.c.l.b16 %v284
    %v300 = vunpack.c.l.b16 %v285
    %v301 = vunpack.c.l.b16 %v286
    %v302 = vpack.c.b16 %v299, %v298
    %v303 = vpack.c.b16 %v301, %v300
    %v307 = vsel %vm207, %v281, 0
    %v310 = vsel %vm207, %v282, 0
    %312 = vmatprep.subr.bf16.mxu0 0
    %313 = vmatpush1.bf16.msra.mxu0 0
    %314 = vmatprep.subr.bf16.mxu0 0
    %315 = vmatpush1.bf16.msra.mxu0 0
    %316 = vmatprep.subr.bf16.mxu0 0
    %317 = vmatpush1.bf16.msra.mxu0 0
    %318 = vmatprep.subr.bf16.mxu0 0
    %319 = vmatpush1.bf16.msra.mxu0 0
    %320 = vmatprep.subr.bf16.mxu0 0
    %321 = vmatpush1.bf16.msra.mxu0 0
    %322 = vmatprep.subr.bf16.mxu0 0
    %323 = vmatpush1.bf16.msra.mxu0 0
    %324 = vmatprep.subr.bf16.mxu0 0
    %325 = vmatpush1.bf16.msra.mxu0 %v303
    %326 = vmatprep.subr.bf16.mxu0 0
    %327 = vmatpush1.bf16.msra.mxu0 %v302
    %328 = vmatprep.subr.bf16.mxu0 0
    %329 = vmatpush2.bf16.msra.mxu0 0
    %330 = vmatprep.subr.bf16.mxu0 0
    %331 = vmatpush2.bf16.msra.mxu0 0
    %332 = vmatprep.subr.bf16.mxu0 0
    %333 = vmatpush2.bf16.msra.mxu0 0
    %334 = vmatprep.subr.bf16.mxu0 0
    %335 = vmatpush2.bf16.msra.mxu0 0
    %336 = vmatprep.subr.bf16.mxu0 0
    %337 = vmatpush2.bf16.msra.mxu0 0
    %338 = vmatprep.subr.bf16.mxu0 0
    %339 = vmatpush2.bf16.msra.mxu0 0
    %340 = vmatprep.subr.bf16.mxu0 0
    %341 = vmatpush2.bf16.msra.mxu0 0
    %342 = vmatprep.subr.bf16.mxu0 0
    %343 = vmatpush2.bf16.msra.mxu0 0
    %344 = vmatprep.mubr.bf16.mxu0 0
    %345 = vmatmul.mubr.bf16.gmra.mxu0 %v307
    %v346 = vpop.f32.mrf.mxu0
    %v347 = vadd.f32 %v292, %v346
    %v348 = vpop.f32.mrf.mxu0
    %v349 = vpop.f32.mrf.mxu0
    %v350 = vadd.f32 %v292, %v349
    %v351 = vpop.f32.mrf.mxu0
    %352 = vmatprep.mubr.bf16.mxu0 0
    %353 = vmatmul.mubr.bf16.gmra.mxu0 %v310
    %v354 = vpop.f32.mrf.mxu0
    %v355 = vadd.f32 %v292, %v354
    %v356 = vpop.f32.mrf.mxu0
    %v357 = vpop.f32.mrf.mxu0
    %v358 = vadd.f32 %v292, %v357
    %v359 = vpop.f32.mrf.mxu0
    %360 = vdwg.mxu0
    %v361 = vld [vmem:[#allocation17] sm:$0xff]
    %v362 = vld [vmem:[#allocation17 + $0x8] sm:$0xff]
    %v363 = vld [vmem:[#allocation17 + $0x10] sm:$0xff]
    %v364 = vld [vmem:[#allocation17 + $0x18] sm:$0xff]
    %v365 = vld [vmem:[#allocation17 + $0x20] sm:$0xff]
    %v366 = vld [vmem:[#allocation17 + $0x28] sm:$0xff]
    %v367 = vld [vmem:[#allocation17 + $0x30] sm:$0xff]
    %v368 = vld [vmem:[#allocation17 + $0x38] sm:$0xff]
    %v369 = vld [vmem:[#allocation17 + $0x40] sm:$0xff]
    %v370 = vld [vmem:[#allocation17 + $0x48] sm:$0xff]
    %v371 = vld [vmem:[#allocation17 + $0x50] sm:$0xff]
    %v372 = vld [vmem:[#allocation17 + $0x58] sm:$0xff]
    %v373 = vld [vmem:[#allocation17 + $0x60] sm:$0xff]
    %v374 = vld [vmem:[#allocation17 + $0x68] sm:$0xff]
    %v375 = vld [vmem:[#allocation17 + $0x70] sm:$0xff]
    %v376 = vld [vmem:[#allocation17 + $0x78] sm:$0xff]
    %v377 = vld [vmem:[#allocation16] sm:$0xff]
    %v378 = vld [vmem:[#allocation16 + $0x8] sm:$0xff]
    %v379 = vld [vmem:[#allocation16 + $0x10] sm:$0xff]
    %v380 = vld [vmem:[#allocation16 + $0x18] sm:$0xff]
    %v381 = vld [vmem:[#allocation16 + $0x20] sm:$0xff]
    %v382 = vld [vmem:[#allocation16 + $0x28] sm:$0xff]
    %v383 = vld [vmem:[#allocation16 + $0x30] sm:$0xff]
    %v384 = vld [vmem:[#allocation16 + $0x38] sm:$0xff]
    %v385 = vld [vmem:[#allocation16 + $0x40] sm:$0xff]
    %v386 = vld [vmem:[#allocation16 + $0x48] sm:$0xff]
    %v387 = vld [vmem:[#allocation16 + $0x50] sm:$0xff]
    %v388 = vld [vmem:[#allocation16 + $0x58] sm:$0xff]
    %v389 = vld [vmem:[#allocation16 + $0x60] sm:$0xff]
    %v390 = vld [vmem:[#allocation16 + $0x68] sm:$0xff]
    %v391 = vld [vmem:[#allocation16 + $0x70] sm:$0xff]
    %v392 = vld [vmem:[#allocation16 + $0x78] sm:$0xff]
    %397 = vrot.lane.b32.xlu0 %v347, 96
    %v398 = vpop.permute.xlu0 %397
    %399 = vrot.lane.b32.xlu0 %v350, 96
    %v400 = vpop.permute.xlu0 %399
    %401 = vrot.lane.b32.xlu0 %v355, 96
    %v402 = vpop.permute.xlu0 %401
    %403 = vrot.lane.b32.xlu0 %v358, 96
    %v404 = vpop.permute.xlu0 %403
    %v410 = vsel %vm207, %v377, 0
    %v413 = vsel %vm207, %v378, 0
    %v416 = vsel %vm207, %v379, 0
    %v419 = vsel %vm207, %v380, 0
    %v422 = vsel %vm207, %v381, 0
    %v425 = vsel %vm207, %v382, 0
    %v428 = vsel %vm207, %v383, 0
    %v431 = vsel %vm207, %v384, 0
    %v434 = vsel %vm207, %v385, 0
    %v437 = vsel %vm207, %v386, 0
    %v440 = vsel %vm207, %v387, 0
    %v443 = vsel %vm207, %v388, 0
    %v446 = vsel %vm207, %v389, 0
    %v449 = vsel %vm207, %v390, 0
    %v452 = vsel %vm207, %v391, 0
    %v455 = vsel %vm207, %v392, 0
    %457 = vmatprep.subr.mxu0 0.0
    %458 = vmatpush1.msra.mxu0 0.0
    %459 = vmatprep.subr.mxu0 0.0
    %460 = vmatpush1.msra.mxu0 0.0
    %461 = vmatprep.subr.mxu0 0.0
    %462 = vmatpush1.msra.mxu0 0.0
    %463 = vmatprep.subr.mxu0 0.0
    %464 = vmatpush1.msra.mxu0 0.0
    %465 = vmatprep.subr.mxu0 0.0
    %466 = vmatpush1.msra.mxu0 0.0
    %467 = vmatprep.subr.mxu0 0.0
    %468 = vmatpush1.msra.mxu0 0.0
    %469 = vmatprep.subr.mxu0 0.0
    %470 = vmatpush1.msra.mxu0 0.0
    %471 = vmatprep.subr.mxu0 0.0
    %472 = vmatpush1.msra.mxu0 0.0
    %473 = vmatprep.subr.mxu0 0.0
    %474 = vmatpush1.msra.mxu0 0.0
    %475 = vmatprep.subr.mxu0 0.0
    %476 = vmatpush1.msra.mxu0 0.0
    %477 = vmatprep.subr.mxu0 0.0
    %478 = vmatpush1.msra.mxu0 0.0
    %479 = vmatprep.subr.mxu0 0.0
    %480 = vmatpush1.msra.mxu0 0.0
    %481 = vmatprep.subr.mxu0 0.0
    %482 = vmatpush1.msra.mxu0 %v404
    %483 = vmatprep.subr.mxu0 0.0
    %484 = vmatpush1.msra.mxu0 %v402
    %485 = vmatprep.subr.mxu0 0.0
    %486 = vmatpush1.msra.mxu0 %v400
    %487 = vmatprep.subr.mxu0 0.0
    %488 = vmatpush1.msra.mxu0 %v398
    %489 = vmatprep.subr.mxu0 0.0
    %490 = vmatpush2.msra.mxu0 0.0
    %491 = vmatprep.subr.mxu0 0.0
    %492 = vmatpush2.msra.mxu0 0.0
    %493 = vmatprep.subr.mxu0 0.0
    %494 = vmatpush2.msra.mxu0 0.0
    %495 = vmatprep.subr.mxu0 0.0
    %496 = vmatpush2.msra.mxu0 0.0
    %497 = vmatprep.subr.mxu0 0.0
    %498 = vmatpush2.msra.mxu0 0.0
    %499 = vmatprep.subr.mxu0 0.0
    %500 = vmatpush2.msra.mxu0 0.0
    %501 = vmatprep.subr.mxu0 0.0
    %502 = vmatpush2.msra.mxu0 0.0
    %503 = vmatprep.subr.mxu0 0.0
    %504 = vmatpush2.msra.mxu0 0.0
    %505 = vmatprep.subr.mxu0 0.0
    %506 = vmatpush2.msra.mxu0 0.0
    %507 = vmatprep.subr.mxu0 0.0
    %508 = vmatpush2.msra.mxu0 0.0
    %509 = vmatprep.subr.mxu0 0.0
    %510 = vmatpush2.msra.mxu0 0.0
    %511 = vmatprep.subr.mxu0 0.0
    %512 = vmatpush2.msra.mxu0 0.0
    %513 = vmatprep.subr.mxu0 0.0
    %514 = vmatpush2.msra.mxu0 0.0
    %515 = vmatprep.subr.mxu0 0.0
    %516 = vmatpush2.msra.mxu0 0.0
    %517 = vmatprep.subr.mxu0 0.0
    %518 = vmatpush2.msra.mxu0 0.0
    %519 = vmatprep.subr.mxu0 0.0
    %520 = vmatpush2.msra.mxu0 0.0
    %521 = vmatprep.mubr.f32.mxu0 0.0
    %522 = vmatmul.mubr.f32.gmra.mxu0 %v410
    %v523 = vpop.f32.mrf.mxu0
    %v524 = vadd.f32 0.0, %v523
    %v525 = vpop.f32.mrf.mxu0
    %526 = vmatprep.mubr.f32.mxu0 0.0
    %527 = vmatmul.mubr.f32.gmra.mxu0 %v413
    %v528 = vpop.f32.mrf.mxu0
    %v529 = vadd.f32 0.0, %v528
    %v530 = vpop.f32.mrf.mxu0
    %531 = vmatprep.mubr.f32.mxu0 0.0
    %532 = vmatmul.mubr.f32.gmra.mxu0 %v416
    %v533 = vpop.f32.mrf.mxu0
    %v534 = vadd.f32 0.0, %v533
    %v535 = vpop.f32.mrf.mxu0
    %536 = vmatprep.mubr.f32.mxu0 0.0
    %537 = vmatmul.mubr.f32.gmra.mxu0 %v419
    %v538 = vpop.f32.mrf.mxu0
    %v539 = vadd.f32 0.0, %v538
    %v540 = vpop.f32.mrf.mxu0
    %541 = vmatprep.mubr.f32.mxu0 0.0
    %542 = vmatmul.mubr.f32.gmra.mxu0 %v422
    %v543 = vpop.f32.mrf.mxu0
    %v544 = vadd.f32 0.0, %v543
    %v545 = vpop.f32.mrf.mxu0
    %546 = vmatprep.mubr.f32.mxu0 0.0
    %547 = vmatmul.mubr.f32.gmra.mxu0 %v425
    %v548 = vpop.f32.mrf.mxu0
    %v549 = vadd.f32 0.0, %v548
    %v550 = vpop.f32.mrf.mxu0
    %551 = vmatprep.mubr.f32.mxu0 0.0
    %552 = vmatmul.mubr.f32.gmra.mxu0 %v428
    %v553 = vpop.f32.mrf.mxu0
    %v554 = vadd.f32 0.0, %v553
    %v555 = vpop.f32.mrf.mxu0
    %556 = vmatprep.mubr.f32.mxu0 0.0
    %557 = vmatmul.mubr.f32.gmra.mxu0 %v431
    %v558 = vpop.f32.mrf.mxu0
    %v559 = vadd.f32 0.0, %v558
    %v560 = vpop.f32.mrf.mxu0
    %561 = vmatprep.mubr.f32.mxu0 0.0
    %562 = vmatmul.mubr.f32.gmra.mxu0 %v434
    %v563 = vpop.f32.mrf.mxu0
    %v564 = vadd.f32 0.0, %v563
    %v565 = vpop.f32.mrf.mxu0
    %566 = vmatprep.mubr.f32.mxu0 0.0
    %567 = vmatmul.mubr.f32.gmra.mxu0 %v437
    %v568 = vpop.f32.mrf.mxu0
    %v569 = vadd.f32 0.0, %v568
    %v570 = vpop.f32.mrf.mxu0
    %571 = vmatprep.mubr.f32.mxu0 0.0
    %572 = vmatmul.mubr.f32.gmra.mxu0 %v440
    %v573 = vpop.f32.mrf.mxu0
    %v574 = vadd.f32 0.0, %v573
    %v575 = vpop.f32.mrf.mxu0
    %576 = vmatprep.mubr.f32.mxu0 0.0
    %577 = vmatmul.mubr.f32.gmra.mxu0 %v443
    %v578 = vpop.f32.mrf.mxu0
    %v579 = vadd.f32 0.0, %v578
    %v580 = vpop.f32.mrf.mxu0
    %581 = vmatprep.mubr.f32.mxu0 0.0
    %582 = vmatmul.mubr.f32.gmra.mxu0 %v446
    %v583 = vpop.f32.mrf.mxu0
    %v584 = vadd.f32 0.0, %v583
    %v585 = vpop.f32.mrf.mxu0
    %586 = vmatprep.mubr.f32.mxu0 0.0
    %587 = vmatmul.mubr.f32.gmra.mxu0 %v449
    %v588 = vpop.f32.mrf.mxu0
    %v589 = vadd.f32 0.0, %v588
    %v590 = vpop.f32.mrf.mxu0
    %591 = vmatprep.mubr.f32.mxu0 0.0
    %592 = vmatmul.mubr.f32.gmra.mxu0 %v452
    %v593 = vpop.f32.mrf.mxu0
    %v594 = vadd.f32 0.0, %v593
    %v595 = vpop.f32.mrf.mxu0
    %596 = vmatprep.mubr.f32.mxu0 0.0
    %597 = vmatmul.mubr.f32.gmra.mxu0 %v455
    %v598 = vpop.f32.mrf.mxu0
    %v599 = vadd.f32 0.0, %v598
    %v600 = vpop.f32.mrf.mxu0
    %601 = vdwg.mxu0
    %v602 = vmul.f32 %v524, %v361
    %v603 = vmul.f32 %v529, %v362
    %v604 = vmul.f32 %v534, %v363
    %v605 = vmul.f32 %v539, %v364
    %v606 = vmul.f32 %v544, %v365
    %v607 = vmul.f32 %v549, %v366
    %v608 = vmul.f32 %v554, %v367
    %v609 = vmul.f32 %v559, %v368
    %v610 = vmul.f32 %v564, %v369
    %v611 = vmul.f32 %v569, %v370
    %v612 = vmul.f32 %v574, %v371
    %v613 = vmul.f32 %v579, %v372
    %v614 = vmul.f32 %v584, %v373
    %v615 = vmul.f32 %v589, %v374
    %v616 = vmul.f32 %v594, %v375
    %v617 = vmul.f32 %v599, %v376
    %618 = vrot.lane.b32.xlu0 %v347, 64
    %v619 = vpop.permute.xlu0 %618
    %620 = vrot.lane.b32.xlu0 %v350, 64
    %v621 = vpop.permute.xlu0 %620
    %622 = vrot.lane.b32.xlu0 %v355, 64
    %v623 = vpop.permute.xlu0 %622
    %624 = vrot.lane.b32.xlu0 %v358, 64
    %v625 = vpop.permute.xlu0 %624
    %630 = vmatprep.subr.mxu0 0.0
    %631 = vmatpush1.msra.mxu0 0.0
    %632 = vmatprep.subr.mxu0 0.0
    %633 = vmatpush1.msra.mxu0 0.0
    %634 = vmatprep.subr.mxu0 0.0
    %635 = vmatpush1.msra.mxu0 0.0
    %636 = vmatprep.subr.mxu0 0.0
    %637 = vmatpush1.msra.mxu0 0.0
    %638 = vmatprep.subr.mxu0 0.0
    %639 = vmatpush1.msra.mxu0 0.0
    %640 = vmatprep.subr.mxu0 0.0
    %641 = vmatpush1.msra.mxu0 0.0
    %642 = vmatprep.subr.mxu0 0.0
    %643 = vmatpush1.msra.mxu0 0.0
    %644 = vmatprep.subr.mxu0 0.0
    %645 = vmatpush1.msra.mxu0 0.0
    %646 = vmatprep.subr.mxu0 0.0
    %647 = vmatpush1.msra.mxu0 0.0
    %648 = vmatprep.subr.mxu0 0.0
    %649 = vmatpush1.msra.mxu0 0.0
    %650 = vmatprep.subr.mxu0 0.0
    %651 = vmatpush1.msra.mxu0 0.0
    %652 = vmatprep.subr.mxu0 0.0
    %653 = vmatpush1.msra.mxu0 0.0
    %654 = vmatprep.subr.mxu0 0.0
    %655 = vmatpush1.msra.mxu0 %v625
    %656 = vmatprep.subr.mxu0 0.0
    %657 = vmatpush1.msra.mxu0 %v623
    %658 = vmatprep.subr.mxu0 0.0
    %659 = vmatpush1.msra.mxu0 %v621
    %660 = vmatprep.subr.mxu0 0.0
    %661 = vmatpush1.msra.mxu0 %v619
    %662 = vmatprep.subr.mxu0 0.0
    %663 = vmatpush2.msra.mxu0 0.0
    %664 = vmatprep.subr.mxu0 0.0
    %665 = vmatpush2.msra.mxu0 0.0
    %666 = vmatprep.subr.mxu0 0.0
    %667 = vmatpush2.msra.mxu0 0.0
    %668 = vmatprep.subr.mxu0 0.0
    %669 = vmatpush2.msra.mxu0 0.0
    %670 = vmatprep.subr.mxu0 0.0
    %671 = vmatpush2.msra.mxu0 0.0
    %672 = vmatprep.subr.mxu0 0.0
    %673 = vmatpush2.msra.mxu0 0.0
    %674 = vmatprep.subr.mxu0 0.0
    %675 = vmatpush2.msra.mxu0 0.0
    %676 = vmatprep.subr.mxu0 0.0
    %677 = vmatpush2.msra.mxu0 0.0
    %678 = vmatprep.subr.mxu0 0.0
    %679 = vmatpush2.msra.mxu0 0.0
    %680 = vmatprep.subr.mxu0 0.0
    %681 = vmatpush2.msra.mxu0 0.0
    %682 = vmatprep.subr.mxu0 0.0
    %683 = vmatpush2.msra.mxu0 0.0
    %684 = vmatprep.subr.mxu0 0.0
    %685 = vmatpush2.msra.mxu0 0.0
    %686 = vmatprep.subr.mxu0 0.0
    %687 = vmatpush2.msra.mxu0 0.0
    %688 = vmatprep.subr.mxu0 0.0
    %689 = vmatpush2.msra.mxu0 0.0
    %690 = vmatprep.subr.mxu0 0.0
    %691 = vmatpush2.msra.mxu0 0.0
    %692 = vmatprep.subr.mxu0 0.0
    %693 = vmatpush2.msra.mxu0 0.0
    %694 = vmatprep.mubr.f32.mxu0 0.0
    %695 = vmatmul.mubr.f32.gmra.mxu0 %v410
    %v696 = vpop.f32.mrf.mxu0
    %v697 = vadd.f32 0.0, %v696
    %v698 = vpop.f32.mrf.mxu0
    %699 = vmatprep.mubr.f32.mxu0 0.0
    %700 = vmatmul.mubr.f32.gmra.mxu0 %v413
    %v701 = vpop.f32.mrf.mxu0
    %v702 = vadd.f32 0.0, %v701
    %v703 = vpop.f32.mrf.mxu0
    %704 = vmatprep.mubr.f32.mxu0 0.0
    %705 = vmatmul.mubr.f32.gmra.mxu0 %v416
    %v706 = vpop.f32.mrf.mxu0
    %v707 = vadd.f32 0.0, %v706
    %v708 = vpop.f32.mrf.mxu0
    %709 = vmatprep.mubr.f32.mxu0 0.0
    %710 = vmatmul.mubr.f32.gmra.mxu0 %v419
    %v711 = vpop.f32.mrf.mxu0
    %v712 = vadd.f32 0.0, %v711
    %v713 = vpop.f32.mrf.mxu0
    %714 = vmatprep.mubr.f32.mxu0 0.0
    %715 = vmatmul.mubr.f32.gmra.mxu0 %v422
    %v716 = vpop.f32.mrf.mxu0
    %v717 = vadd.f32 0.0, %v716
    %v718 = vpop.f32.mrf.mxu0
    %719 = vmatprep.mubr.f32.mxu0 0.0
    %720 = vmatmul.mubr.f32.gmra.mxu0 %v425
    %v721 = vpop.f32.mrf.mxu0
    %v722 = vadd.f32 0.0, %v721
    %v723 = vpop.f32.mrf.mxu0
    %724 = vmatprep.mubr.f32.mxu0 0.0
    %725 = vmatmul.mubr.f32.gmra.mxu0 %v428
    %v726 = vpop.f32.mrf.mxu0
    %v727 = vadd.f32 0.0, %v726
    %v728 = vpop.f32.mrf.mxu0
    %729 = vmatprep.mubr.f32.mxu0 0.0
    %730 = vmatmul.mubr.f32.gmra.mxu0 %v431
    %v731 = vpop.f32.mrf.mxu0
    %v732 = vadd.f32 0.0, %v731
    %v733 = vpop.f32.mrf.mxu0
    %734 = vmatprep.mubr.f32.mxu0 0.0
    %735 = vmatmul.mubr.f32.gmra.mxu0 %v434
    %v736 = vpop.f32.mrf.mxu0
    %v737 = vadd.f32 0.0, %v736
    %v738 = vpop.f32.mrf.mxu0
    %739 = vmatprep.mubr.f32.mxu0 0.0
    %740 = vmatmul.mubr.f32.gmra.mxu0 %v437
    %v741 = vpop.f32.mrf.mxu0
    %v742 = vadd.f32 0.0, %v741
    %v743 = vpop.f32.mrf.mxu0
    %744 = vmatprep.mubr.f32.mxu0 0.0
    %745 = vmatmul.mubr.f32.gmra.mxu0 %v440
    %v746 = vpop.f32.mrf.mxu0
    %v747 = vadd.f32 0.0, %v746
    %v748 = vpop.f32.mrf.mxu0
    %749 = vmatprep.mubr.f32.mxu0 0.0
    %750 = vmatmul.mubr.f32.gmra.mxu0 %v443
    %v751 = vpop.f32.mrf.mxu0
    %v752 = vadd.f32 0.0, %v751
    %v753 = vpop.f32.mrf.mxu0
    %754 = vmatprep.mubr.f32.mxu0 0.0
    %755 = vmatmul.mubr.f32.gmra.mxu0 %v446
    %v756 = vpop.f32.mrf.mxu0
    %v757 = vadd.f32 0.0, %v756
    %v758 = vpop.f32.mrf.mxu0
    %759 = vmatprep.mubr.f32.mxu0 0.0
    %760 = vmatmul.mubr.f32.gmra.mxu0 %v449
    %v761 = vpop.f32.mrf.mxu0
    %v762 = vadd.f32 0.0, %v761
    %v763 = vpop.f32.mrf.mxu0
    %764 = vmatprep.mubr.f32.mxu0 0.0
    %765 = vmatmul.mubr.f32.gmra.mxu0 %v452
    %v766 = vpop.f32.mrf.mxu0
    %v767 = vadd.f32 0.0, %v766
    %v768 = vpop.f32.mrf.mxu0
    %769 = vmatprep.mubr.f32.mxu0 0.0
    %770 = vmatmul.mubr.f32.gmra.mxu0 %v455
    %v771 = vpop.f32.mrf.mxu0
    %v772 = vadd.f32 0.0, %v771
    %v773 = vpop.f32.mrf.mxu0
    %774 = vdwg.mxu0
    %v775 = vmul.f32 %v697, %v361
    %v776 = vmul.f32 %v702, %v362
    %v777 = vmul.f32 %v707, %v363
    %v778 = vmul.f32 %v712, %v364
    %v779 = vmul.f32 %v717, %v365
    %v780 = vmul.f32 %v722, %v366
    %v781 = vmul.f32 %v727, %v367
    %v782 = vmul.f32 %v732, %v368
    %v783 = vmul.f32 %v737, %v369
    %v784 = vmul.f32 %v742, %v370
    %v785 = vmul.f32 %v747, %v371
    %v786 = vmul.f32 %v752, %v372
    %v787 = vmul.f32 %v757, %v373
    %v788 = vmul.f32 %v762, %v374
    %v789 = vmul.f32 %v767, %v375
    %v790 = vmul.f32 %v772, %v376
    %v791 = vpack.c.bf16 %v350, %v347
    %v792 = vpack.c.bf16 %v358, %v355
    %v793 = vpack.c.bf16 %v603, %v602
    %v794 = vpack.c.bf16 %v605, %v604
    %v795 = vpack.c.bf16 %v607, %v606
    %v796 = vpack.c.bf16 %v609, %v608
    %v797 = vpack.c.bf16 %v611, %v610
    %v798 = vpack.c.bf16 %v613, %v612
    %v799 = vpack.c.bf16 %v615, %v614
    %v800 = vpack.c.bf16 %v617, %v616
    %v801 = vld [vmem:[%s15] sm:$0xff]
    %v802 = vld [vmem:[%s15 + $0x8] sm:$0xff]
    %v803 = vld [vmem:[%s15 + $0x10] sm:$0xff]
    %v804 = vld [vmem:[%s15 + $0x18] sm:$0xff]
    %v806 = vsel %vm207, %v791, 0
    %v809 = vsel %vm207, %v792, 0
    %v812 = vsel %vm207, %v793, 0
    %v815 = vsel %vm207, %v794, 0
    %v818 = vsel %vm207, %v795, 0
    %v821 = vsel %vm207, %v796, 0
    %v824 = vsel %vm207, %v797, 0
    %v827 = vsel %vm207, %v798, 0
    %v830 = vsel %vm207, %v799, 0
    %v833 = vsel %vm207, %v800, 0
    %835 = vmatprep.subr.bf16.mxu0 0
    %836 = vmatpush1.bf16.xpose.msra.mxu0 %v833
    %837 = vmatprep.subr.bf16.mxu0 0
    %838 = vmatpush1.bf16.xpose.msra.mxu0 %v830
    %839 = vmatprep.subr.bf16.mxu0 0
    %840 = vmatpush1.bf16.xpose.msra.mxu0 %v827
    %841 = vmatprep.subr.bf16.mxu0 0
    %842 = vmatpush1.bf16.xpose.msra.mxu0 %v824
    %843 = vmatprep.subr.bf16.mxu0 0
    %844 = vmatpush1.bf16.xpose.msra.mxu0 %v821
    %845 = vmatprep.subr.bf16.mxu0 0
    %846 = vmatpush1.bf16.xpose.msra.mxu0 %v818
    %847 = vmatprep.subr.bf16.mxu0 0
    %848 = vmatpush1.bf16.xpose.msra.mxu0 %v815
    %849 = vmatprep.subr.bf16.mxu0 0
    %850 = vmatpush1.bf16.xpose.msra.mxu0 %v812
    %851 = vmatprep.subr.bf16.mxu0 0
    %852 = vmatpush2.bf16.xpose.msra.mxu0 0
    %853 = vmatprep.subr.bf16.mxu0 0
    %854 = vmatpush2.bf16.xpose.msra.mxu0 0
    %855 = vmatprep.subr.bf16.mxu0 0
    %856 = vmatpush2.bf16.xpose.msra.mxu0 0
    %857 = vmatprep.subr.bf16.mxu0 0
    %858 = vmatpush2.bf16.xpose.msra.mxu0 0
    %859 = vmatprep.subr.bf16.mxu0 0
    %860 = vmatpush2.bf16.xpose.msra.mxu0 0
    %861 = vmatprep.subr.bf16.mxu0 0
    %862 = vmatpush2.bf16.xpose.msra.mxu0 0
    %863 = vmatprep.subr.bf16.mxu0 0
    %864 = vmatpush2.bf16.xpose.msra.mxu0 0
    %865 = vmatprep.subr.bf16.mxu0 0
    %866 = vmatpush2.bf16.xpose.msra.mxu0 0
    %867 = vmatprep.mubr.bf16.mxu0 0
    %868 = vmatmul.mubr.bf16.gmra.mxu0 %v806
    %v869 = vpop.f32.mrf.mxu0
    %v870 = vadd.f32 %v801, %v869
    %v871 = vpop.f32.mrf.mxu0
    %v872 = vpop.f32.mrf.mxu0
    %v873 = vadd.f32 %v802, %v872
    %v874 = vpop.f32.mrf.mxu0
    %875 = vmatprep.mubr.bf16.mxu0 0
    %876 = vmatmul.mubr.bf16.gmra.mxu0 %v809
    %v877 = vpop.f32.mrf.mxu0
    %v878 = vadd.f32 %v803, %v877
    %v879 = vpop.f32.mrf.mxu0
    %v880 = vpop.f32.mrf.mxu0
    %v881 = vadd.f32 %v804, %v880
    %v882 = vpop.f32.mrf.mxu0
    %883 = vdwg.mxu0
    %v884 = vld [vmem:[%s16] sm:$0xf]
    %v885 = vsel %vm207, %v870, -inf
    %886 = vmax.xlane.f32.xlu0 %v885
    %v887 = vpop.xlane.xlu0 %886
    %v888 = vsel %vm207, %v873, -inf
    %889 = vmax.xlane.f32.xlu0 %v888
    %v890 = vpop.xlane.xlu0 %889
    %v891 = vsel %vm207, %v878, -inf
    %892 = vmax.xlane.f32.xlu0 %v891
    %v893 = vpop.xlane.xlu0 %892
    %v894 = vsel %vm207, %v881, -inf
    %895 = vmax.xlane.f32.xlu0 %v894
    %v896 = vpop.xlane.xlu0 %895
    %v897 = vlaneseq
    %v898 = vshrl.u32 %v897, 7
    %v899 = vsub.s32 0, %v898
    %v900 = vrot.slane %v884, %v899
    %v901 = vmul.f32 %v887, %v900
    %v902 = vmul.f32 %v890, %v900
    %v903 = vmul.f32 %v893, %v900
    %v904 = vmul.f32 %v896, %v900
    %vm905 = vcmask 523520
    %v906 = vsel %vm905, %v870, -inf
    %907 = vmax.xlane.f32.xlu0 %v906
    %v908 = vpop.xlane.xlu0 %907
    %v909 = vsel %vm905, %v873, -inf
    %910 = vmax.xlane.f32.xlu0 %v909
    %v911 = vpop.xlane.xlu0 %910
    %v912 = vsel %vm905, %v878, -inf
    %913 = vmax.xlane.f32.xlu0 %v912
    %v914 = vpop.xlane.xlu0 %913
    %v915 = vsel %vm905, %v881, -inf
    %916 = vmax.xlane.f32.xlu0 %v915
    %v917 = vpop.xlane.xlu0 %916
    %v918 = vlaneseq
    %v919 = vshrl.u32 %v918, 7
    %v920 = vsub.s32 1, %v919
    %v921 = vrot.slane %v884, %v920
    %v922 = vmul.f32 %v908, %v921
    %v923 = vmul.f32 %v911, %v921
    %v924 = vmul.f32 %v914, %v921
    %v925 = vmul.f32 %v917, %v921
    %v926 = vadd.f32 %v901, %v922
    %v927 = vadd.f32 %v902, %v923
    %v928 = vadd.f32 %v903, %v924
    %v929 = vadd.f32 %v904, %v925
    %vm930 = vcmask 785920
    %v931 = vsel %vm930, %v870, -inf
    %932 = vmax.xlane.f32.xlu0 %v931
    %v933 = vpop.xlane.xlu0 %932
    %v934 = vsel %vm930, %v873, -inf
    %935 = vmax.xlane.f32.xlu0 %v934
    %v936 = vpop.xlane.xlu0 %935
    %v937 = vsel %vm930, %v878, -inf
    %938 = vmax.xlane.f32.xlu0 %v937
    %v939 = vpop.xlane.xlu0 %938
    %v940 = vsel %vm930, %v881, -inf
    %941 = vmax.xlane.f32.xlu0 %v940
    %v942 = vpop.xlane.xlu0 %941
    %v943 = vlaneseq
    %v944 = vshrl.u32 %v943, 7
    %v945 = vsub.s32 2, %v944
    %v946 = vrot.slane %v884, %v945
    %v947 = vmul.f32 %v933, %v946
    %v948 = vmul.f32 %v936, %v946
    %v949 = vmul.f32 %v939, %v946
    %v950 = vmul.f32 %v942, %v946
    %v951 = vadd.f32 %v926, %v947
    %v952 = vadd.f32 %v927, %v948
    %v953 = vadd.f32 %v928, %v949
    %v954 = vadd.f32 %v929, %v950
    %vm955 = vcmask 1048320
    %v956 = vsel %vm955, %v870, -inf
    %957 = vmax.xlane.f32.xlu0 %v956
    %v958 = vpop.xlane.xlu0 %957
    %v959 = vsel %vm955, %v873, -inf
    %960 = vmax.xlane.f32.xlu0 %v959
    %v961 = vpop.xlane.xlu0 %960
    %v962 = vsel %vm955, %v878, -inf
    %963 = vmax.xlane.f32.xlu0 %v962
    %v964 = vpop.xlane.xlu0 %963
    %v965 = vsel %vm955, %v881, -inf
    %966 = vmax.xlane.f32.xlu0 %v965
    %v967 = vpop.xlane.xlu0 %966
    %v968 = vlaneseq
    %v969 = vshrl.u32 %v968, 7
    %v970 = vsub.s32 3, %v969
    %v971 = vrot.slane %v884, %v970
    %v972 = vmul.f32 %v958, %v971
    %v973 = vmul.f32 %v961, %v971
    %v974 = vmul.f32 %v964, %v971
    %v975 = vmul.f32 %v967, %v971
    %v976 = vadd.f32 %v951, %v972
    %v977 = vadd.f32 %v952, %v973
    %v978 = vadd.f32 %v953, %v974
    %v979 = vadd.f32 %v954, %v975
    %v980 = vsub.f32 %v870, %v976
    %v981 = vsub.f32 %v873, %v977
    %v982 = vsub.f32 %v878, %v978
    %v983 = vsub.f32 %v881, %v979
    %v984 = vmul.f32 %v980, 1.442695
    %v985 = vpow.pop %v984
    %v986 = vmul.f32 %v981, 1.442695
    %v987 = vpow.pop %v986
    %v988 = vmul.f32 %v982, 1.442695
    %v989 = vpow.pop %v988
    %v990 = vmul.f32 %v983, 1.442695
    %v991 = vpow.pop %v990
    %992 = vmatprep.subr.mxu0 0.0
    %993 = vmatpush1.xpose.msra.mxu0 0.0
    %994 = vmatprep.subr.mxu0 0.0
    %995 = vmatpush1.xpose.msra.mxu0 0.0
    %996 = vmatprep.subr.mxu0 0.0
    %997 = vmatpush1.xpose.msra.mxu0 0.0
    %998 = vmatprep.subr.mxu0 0.0
    %999 = vmatpush1.xpose.msra.mxu0 0.0
    %1000 = vmatprep.subr.mxu0 0.0
    %1001 = vmatpush1.xpose.msra.mxu0 0.0
    %1002 = vmatprep.subr.mxu0 0.0
    %1003 = vmatpush1.xpose.msra.mxu0 0.0
    %1004 = vmatprep.subr.mxu0 0.0
    %1005 = vmatpush1.xpose.msra.mxu0 0.0
    %1006 = vmatprep.subr.mxu0 0.0
    %1007 = vmatpush1.xpose.msra.mxu0 0.0
    %1008 = vmatprep.subr.mxu0 0.0
    %1009 = vmatpush1.xpose.msra.mxu0 0.0
    %1010 = vmatprep.subr.mxu0 0.0
    %1011 = vmatpush1.xpose.msra.mxu0 0.0
    %1012 = vmatprep.subr.mxu0 0.0
    %1013 = vmatpush1.xpose.msra.mxu0 0.0
    %1014 = vmatprep.subr.mxu0 0.0
    %1015 = vmatpush1.xpose.msra.mxu0 0.0
    %1016 = vmatprep.subr.mxu0 0.0
    %1017 = vmatpush1.xpose.msra.mxu0 0.0
    %1018 = vmatprep.subr.mxu0 0.0
    %1019 = vmatpush1.xpose.msra.mxu0 0.0
    %1020 = vmatprep.subr.mxu0 0.0
    %1021 = vmatpush1.xpose.msra.mxu0 0.0
    %1022 = vmatprep.subr.mxu0 0.0
    %1023 = vmatpush1.xpose.msra.mxu0 %v884
    %1024 = vmatprep.subr.mxu0 0.0
    %1025 = vmatpush2.xpose.msra.mxu0 0.0
    %1026 = vmatprep.subr.mxu0 0.0
    %1027 = vmatpush2.xpose.msra.mxu0 0.0
    %1028 = vmatprep.subr.mxu0 0.0
    %1029 = vmatpush2.xpose.msra.mxu0 0.0
    %1030 = vmatprep.subr.mxu0 0.0
    %1031 = vmatpush2.xpose.msra.mxu0 0.0
    %1032 = vmatprep.subr.mxu0 0.0
    %1033 = vmatpush2.xpose.msra.mxu0 0.0
    %1034 = vmatprep.subr.mxu0 0.0
    %1035 = vmatpush2.xpose.msra.mxu0 0.0
    %1036 = vmatprep.subr.mxu0 0.0
    %1037 = vmatpush2.xpose.msra.mxu0 0.0
    %1038 = vmatprep.subr.mxu0 0.0
    %1039 = vmatpush2.xpose.msra.mxu0 0.0
    %1040 = vmatprep.subr.mxu0 0.0
    %1041 = vmatpush2.xpose.msra.mxu0 0.0
    %1042 = vmatprep.subr.mxu0 0.0
    %1043 = vmatpush2.xpose.msra.mxu0 0.0
    %1044 = vmatprep.subr.mxu0 0.0
    %1045 = vmatpush2.xpose.msra.mxu0 0.0
    %1046 = vmatprep.subr.mxu0 0.0
    %1047 = vmatpush2.xpose.msra.mxu0 0.0
    %1048 = vmatprep.subr.mxu0 0.0
    %1049 = vmatpush2.xpose.msra.mxu0 0.0
    %1050 = vmatprep.subr.mxu0 0.0
    %1051 = vmatpush2.xpose.msra.mxu0 0.0
    %1052 = vmatprep.subr.mxu0 0.0
    %1053 = vmatpush2.xpose.msra.mxu0 0.0
    %1054 = vmatprep.subr.mxu0 0.0
    %1055 = vmatpush2.xpose.msra.mxu0 0.0
    %1056 = vmatprep.mubr.f32.mxu0 0.0
    %1057 = vmatmul.mubr.f32.gmra.mxu0 %v985
    %v1058 = vpop.f32.mrf.mxu0
    %v1059 = vadd.f32 0.0, %v1058
    %v1060 = vpop.f32.mrf.mxu0
    %1061 = vmatprep.mubr.f32.mxu0 0.0
    %1062 = vmatmul.mubr.f32.gmra.mxu0 %v987
    %v1063 = vpop.f32.mrf.mxu0
    %v1064 = vadd.f32 0.0, %v1063
    %v1065 = vpop.f32.mrf.mxu0
    %1066 = vmatprep.mubr.f32.mxu0 0.0
    %1067 = vmatmul.mubr.f32.gmra.mxu0 %v989
    %v1068 = vpop.f32.mrf.mxu0
    %v1069 = vadd.f32 0.0, %v1068
    %v1070 = vpop.f32.mrf.mxu0
    %1071 = vmatprep.mubr.f32.mxu0 0.0
    %1072 = vmatmul.mubr.f32.gmra.mxu0 %v991
    %v1073 = vpop.f32.mrf.mxu0
    %v1074 = vadd.f32 0.0, %v1073
    %v1075 = vpop.f32.mrf.mxu0
    %1076 = vdwg.mxu0
    %v1077 = vrcp.pop %v1059
    %v1078 = vrcp.pop %v1064
    %v1079 = vrcp.pop %v1069
    %v1080 = vrcp.pop %v1074
    %vm1081 = vcmask 31744
    %v1083 = vsel %vm1081, %v1077, 0
    %v1086 = vsel %vm1081, %v1078, 0
    %v1089 = vsel %vm1081, %v1079, 0
    %v1092 = vsel %vm1081, %v1080, 0
    %vm1094 = vcmask 1043456
    %v1096 = vsel %vm1094, %v884, 0
    %1098 = vmatprep.subr.mxu0 0.0
    %1099 = vmatpush1.msra.mxu0 0.0
    %1100 = vmatprep.subr.mxu0 0.0
    %1101 = vmatpush1.msra.mxu0 0.0
    %1102 = vmatprep.subr.mxu0 0.0
    %1103 = vmatpush1.msra.mxu0 0.0
    %1104 = vmatprep.subr.mxu0 0.0
    %1105 = vmatpush1.msra.mxu0 0.0
    %1106 = vmatprep.subr.mxu0 0.0
    %1107 = vmatpush1.msra.mxu0 0.0
    %1108 = vmatprep.subr.mxu0 0.0
    %1109 = vmatpush1.msra.mxu0 0.0
    %1110 = vmatprep.subr.mxu0 0.0
    %1111 = vmatpush1.msra.mxu0 0.0
    %1112 = vmatprep.subr.mxu0 0.0
    %1113 = vmatpush1.msra.mxu0 0.0
    %1114 = vmatprep.subr.mxu0 0.0
    %1115 = vmatpush1.msra.mxu0 0.0
    %1116 = vmatprep.subr.mxu0 0.0
    %1117 = vmatpush1.msra.mxu0 0.0
    %1118 = vmatprep.subr.mxu0 0.0
    %1119 = vmatpush1.msra.mxu0 0.0
    %1120 = vmatprep.subr.mxu0 0.0
    %1121 = vmatpush1.msra.mxu0 0.0
    %1122 = vmatprep.subr.mxu0 0.0
    %1123 = vmatpush1.msra.mxu0 0.0
    %1124 = vmatprep.subr.mxu0 0.0
    %1125 = vmatpush1.msra.mxu0 0.0
    %1126 = vmatprep.subr.mxu0 0.0
    %1127 = vmatpush1.msra.mxu0 0.0
    %1128 = vmatprep.subr.mxu0 0.0
    %1129 = vmatpush1.msra.mxu0 %v1096
    %1130 = vmatprep.subr.mxu0 0.0
    %1131 = vmatpush2.msra.mxu0 0.0
    %1132 = vmatprep.subr.mxu0 0.0
    %1133 = vmatpush2.msra.mxu0 0.0
    %1134 = vmatprep.subr.mxu0 0.0
    %1135 = vmatpush2.msra.mxu0 0.0
    %1136 = vmatprep.subr.mxu0 0.0
    %1137 = vmatpush2.msra.mxu0 0.0
    %1138 = vmatprep.subr.mxu0 0.0
    %1139 = vmatpush2.msra.mxu0 0.0
    %1140 = vmatprep.subr.mxu0 0.0
    %1141 = vmatpush2.msra.mxu0 0.0
    %1142 = vmatprep.subr.mxu0 0.0
    %1143 = vmatpush2.msra.mxu0 0.0
    %1144 = vmatprep.subr.mxu0 0.0
    %1145 = vmatpush2.msra.mxu0 0.0
    %1146 = vmatprep.subr.mxu0 0.0
    %1147 = vmatpush2.msra.mxu0 0.0
    %1148 = vmatprep.subr.mxu0 0.0
    %1149 = vmatpush2.msra.mxu0 0.0
    %1150 = vmatprep.subr.mxu0 0.0
    %1151 = vmatpush2.msra.mxu0 0.0
    %1152 = vmatprep.subr.mxu0 0.0
    %1153 = vmatpush2.msra.mxu0 0.0
    %1154 = vmatprep.subr.mxu0 0.0
    %1155 = vmatpush2.msra.mxu0 0.0
    %1156 = vmatprep.subr.mxu0 0.0
    %1157 = vmatpush2.msra.mxu0 0.0
    %1158 = vmatprep.subr.mxu0 0.0
    %1159 = vmatpush2.msra.mxu0 0.0
    %1160 = vmatprep.subr.mxu0 0.0
    %1161 = vmatpush2.msra.mxu0 0.0
    %1162 = vmatprep.mubr.f32.mxu0 0.0
    %1163 = vmatmul.mubr.f32.gmra.mxu0 %v1083
    %v1164 = vpop.f32.mrf.mxu0
    %v1165 = vadd.f32 0.0, %v1164
    %v1166 = vpop.f32.mrf.mxu0
    %1167 = vmatprep.mubr.f32.mxu0 0.0
    %1168 = vmatmul.mubr.f32.gmra.mxu0 %v1086
    %v1169 = vpop.f32.mrf.mxu0
    %v1170 = vadd.f32 0.0, %v1169
    %v1171 = vpop.f32.mrf.mxu0
    %1172 = vmatprep.mubr.f32.mxu0 0.0
    %1173 = vmatmul.mubr.f32.gmra.mxu0 %v1089
    %v1174 = vpop.f32.mrf.mxu0
    %v1175 = vadd.f32 0.0, %v1174
    %v1176 = vpop.f32.mrf.mxu0
    %1177 = vmatprep.mubr.f32.mxu0 0.0
    %1178 = vmatmul.mubr.f32.gmra.mxu0 %v1092
    %v1179 = vpop.f32.mrf.mxu0
    %v1180 = vadd.f32 0.0, %v1179
    %v1181 = vpop.f32.mrf.mxu0
    %1182 = vdwg.mxu0
    %v1183 = vmul.f32 %v985, %v1165
    %v1184 = vmul.f32 %v987, %v1170
    %v1185 = vmul.f32 %v989, %v1175
    %v1186 = vmul.f32 %v991, %v1180
    %v1187 = vld [vmem:[#allocation19] sm:$0xff]
    %v1188 = vld [vmem:[#allocation19 + $0x8] sm:$0xff]
    %v1189 = vld [vmem:[#allocation19 + $0x10] sm:$0xff]
    %v1190 = vld [vmem:[#allocation19 + $0x18] sm:$0xff]
    %v1191 = vld [vmem:[#allocation19 + $0x20] sm:$0xff]
    %v1192 = vld [vmem:[#allocation19 + $0x28] sm:$0xff]
    %v1193 = vld [vmem:[#allocation19 + $0x30] sm:$0xff]
    %v1194 = vld [vmem:[#allocation19 + $0x38] sm:$0xff]
    %v1195 = vld [vmem:[#allocation19 + $0x40] sm:$0xff]
    %v1196 = vld [vmem:[#allocation19 + $0x48] sm:$0xff]
    %v1197 = vld [vmem:[#allocation19 + $0x50] sm:$0xff]
    %v1198 = vld [vmem:[#allocation19 + $0x58] sm:$0xff]
    %v1199 = vld [vmem:[#allocation19 + $0x60] sm:$0xff]
    %v1200 = vld [vmem:[#allocation19 + $0x68] sm:$0xff]
    %v1201 = vld [vmem:[#allocation19 + $0x70] sm:$0xff]
    %v1202 = vld [vmem:[#allocation19 + $0x78] sm:$0xff]
    %1203 = vmatprep.subr.mxu0 0.0
    %1204 = vmatpush1.msra.mxu0 %v1202
    %1205 = vmatprep.subr.mxu0 0.0
    %1206 = vmatpush1.msra.mxu0 %v1201
    %1207 = vmatprep.subr.mxu0 0.0
    %1208 = vmatpush1.msra.mxu0 %v1200
    %1209 = vmatprep.subr.mxu0 0.0
    %1210 = vmatpush1.msra.mxu0 %v1199
    %1211 = vmatprep.subr.mxu0 0.0
    %1212 = vmatpush1.msra.mxu0 %v1198
    %1213 = vmatprep.subr.mxu0 0.0
    %1214 = vmatpush1.msra.mxu0 %v1197
    %1215 = vmatprep.subr.mxu0 0.0
    %1216 = vmatpush1.msra.mxu0 %v1196
    %1217 = vmatprep.subr.mxu0 0.0
    %1218 = vmatpush1.msra.mxu0 %v1195
    %1219 = vmatprep.subr.mxu0 0.0
    %1220 = vmatpush1.msra.mxu0 %v1194
    %1221 = vmatprep.subr.mxu0 0.0
    %1222 = vmatpush1.msra.mxu0 %v1193
    %1223 = vmatprep.subr.mxu0 0.0
    %1224 = vmatpush1.msra.mxu0 %v1192
    %1225 = vmatprep.subr.mxu0 0.0
    %1226 = vmatpush1.msra.mxu0 %v1191
    %1227 = vmatprep.subr.mxu0 0.0
    %1228 = vmatpush1.msra.mxu0 %v1190
    %1229 = vmatprep.subr.mxu0 0.0
    %1230 = vmatpush1.msra.mxu0 %v1189
    %1231 = vmatprep.subr.mxu0 0.0
    %1232 = vmatpush1.msra.mxu0 %v1188
    %1233 = vmatprep.subr.mxu0 0.0
    %1234 = vmatpush1.msra.mxu0 %v1187
    %1235 = vmatprep.subr.mxu0 0.0
    %1236 = vmatpush2.msra.mxu0 0.0
    %1237 = vmatprep.subr.mxu0 0.0
    %1238 = vmatpush2.msra.mxu0 0.0
    %1239 = vmatprep.subr.mxu0 0.0
    %1240 = vmatpush2.msra.mxu0 0.0
    %1241 = vmatprep.subr.mxu0 0.0
    %1242 = vmatpush2.msra.mxu0 0.0
    %1243 = vmatprep.subr.mxu0 0.0
    %1244 = vmatpush2.msra.mxu0 0.0
    %1245 = vmatprep.subr.mxu0 0.0
    %1246 = vmatpush2.msra.mxu0 0.0
    %1247 = vmatprep.subr.mxu0 0.0
    %1248 = vmatpush2.msra.mxu0 0.0
    %1249 = vmatprep.subr.mxu0 0.0
    %1250 = vmatpush2.msra.mxu0 0.0
    %1251 = vmatprep.subr.mxu0 0.0
    %1252 = vmatpush2.msra.mxu0 0.0
    %1253 = vmatprep.subr.mxu0 0.0
    %1254 = vmatpush2.msra.mxu0 0.0
    %1255 = vmatprep.subr.mxu0 0.0
    %1256 = vmatpush2.msra.mxu0 0.0
    %1257 = vmatprep.subr.mxu0 0.0
    %1258 = vmatpush2.msra.mxu0 0.0
    %1259 = vmatprep.subr.mxu0 0.0
    %1260 = vmatpush2.msra.mxu0 0.0
    %1261 = vmatprep.subr.mxu0 0.0
    %1262 = vmatpush2.msra.mxu0 0.0
    %1263 = vmatprep.subr.mxu0 0.0
    %1264 = vmatpush2.msra.mxu0 0.0
    %1265 = vmatprep.subr.mxu0 0.0
    %1266 = vmatpush2.msra.mxu0 0.0
    %1267 = vmatprep.mubr.f32.mxu0 0.0
    %1268 = vmatmul.mubr.f32.gmra.mxu0 %v1183
    %v1269 = vpop.f32.mrf.mxu0
    %v1270 = vadd.f32 0.0, %v1269
    %v1271 = vpop.f32.mrf.mxu0
    %1272 = vmatprep.mubr.f32.mxu0 0.0
    %1273 = vmatmul.mubr.f32.gmra.mxu0 %v1184
    %v1274 = vpop.f32.mrf.mxu0
    %v1275 = vadd.f32 0.0, %v1274
    %v1276 = vpop.f32.mrf.mxu0
    %1277 = vmatprep.mubr.f32.mxu0 0.0
    %1278 = vmatmul.mubr.f32.gmra.mxu0 %v1185
    %v1279 = vpop.f32.mrf.mxu0
    %v1280 = vadd.f32 0.0, %v1279
    %v1281 = vpop.f32.mrf.mxu0
    %1282 = vmatprep.mubr.f32.mxu0 0.0
    %1283 = vmatmul.mubr.f32.gmra.mxu0 %v1186
    %v1284 = vpop.f32.mrf.mxu0
    %v1285 = vadd.f32 0.0, %v1284
    %v1286 = vpop.f32.mrf.mxu0
    %1287 = vdwg.mxu0
    %vm1288 = vcmask 130048
    %1289 = vst.msk [vmem:[#allocation21] sm:$0xff] %vm1288, %v1270
    %1290 = vst.msk [vmem:[#allocation21 + $0x8] sm:$0xff] %vm1288, %v1275
    %1291 = vst.msk [vmem:[#allocation21 + $0x10] sm:$0xff] %vm1288, %v1280
    %1292 = vst.msk [vmem:[#allocation21 + $0x18] sm:$0xff] %vm1288, %v1285
    %v1293 = vpack.c.bf16 %v1184, %v1183
    %v1294 = vpack.c.bf16 %v1186, %v1185
    %v1295 = vpack.c.bf16 %v776, %v775
    %v1296 = vpack.c.bf16 %v778, %v777
    %v1297 = vpack.c.bf16 %v780, %v779
    %v1298 = vpack.c.bf16 %v782, %v781
    %v1299 = vpack.c.bf16 %v784, %v783
    %v1300 = vpack.c.bf16 %v786, %v785
    %v1301 = vpack.c.bf16 %v788, %v787
    %v1302 = vpack.c.bf16 %v790, %v789
    %1303 = vmatprep.subr.bf16.mxu0 0
    %1304 = vmatpush1.bf16.msra.mxu0 %v1302
    %1305 = vmatprep.subr.bf16.mxu0 0
    %1306 = vmatpush1.bf16.msra.mxu0 %v1301
    %1307 = vmatprep.subr.bf16.mxu0 0
    %1308 = vmatpush1.bf16.msra.mxu0 %v1300
    %1309 = vmatprep.subr.bf16.mxu0 0
    %1310 = vmatpush1.bf16.msra.mxu0 %v1299
    %1311 = vmatprep.subr.bf16.mxu0 0
    %1312 = vmatpush1.bf16.msra.mxu0 %v1298
    %1313 = vmatprep.subr.bf16.mxu0 0
    %1314 = vmatpush1.bf16.msra.mxu0 %v1297
    %1315 = vmatprep.subr.bf16.mxu0 0
    %1316 = vmatpush1.bf16.msra.mxu0 %v1296
    %1317 = vmatprep.subr.bf16.mxu0 0
    %1318 = vmatpush1.bf16.msra.mxu0 %v1295
    %1319 = vmatprep.subr.bf16.mxu0 0
    %1320 = vmatpush2.bf16.msra.mxu0 0
    %1321 = vmatprep.subr.bf16.mxu0 0
    %1322 = vmatpush2.bf16.msra.mxu0 0
    %1323 = vmatprep.subr.bf16.mxu0 0
    %1324 = vmatpush2.bf16.msra.mxu0 0
    %1325 = vmatprep.subr.bf16.mxu0 0
    %1326 = vmatpush2.bf16.msra.mxu0 0
    %1327 = vmatprep.subr.bf16.mxu0 0
    %1328 = vmatpush2.bf16.msra.mxu0 0
    %1329 = vmatprep.subr.bf16.mxu0 0
    %1330 = vmatpush2.bf16.msra.mxu0 0
    %1331 = vmatprep.subr.bf16.mxu0 0
    %1332 = vmatpush2.bf16.msra.mxu0 0
    %1333 = vmatprep.subr.bf16.mxu0 0
    %1334 = vmatpush2.bf16.msra.mxu0 0
    %1335 = vmatprep.mubr.bf16.mxu0 0
    %1336 = vmatmul.mubr.bf16.gmra.mxu0 %v1293
    %v1337 = vpop.f32.mrf.mxu0
    %v1338 = vadd.f32 0.0, %v1337
    %v1339 = vpop.f32.mrf.mxu0
    %v1340 = vpop.f32.mrf.mxu0
    %v1341 = vadd.f32 0.0, %v1340
    %v1342 = vpop.f32.mrf.mxu0
    %1343 = vmatprep.mubr.bf16.mxu0 0
    %1344 = vmatmul.mubr.bf16.gmra.mxu0 %v1294
    %v1345 = vpop.f32.mrf.mxu0
    %v1346 = vadd.f32 0.0, %v1345
    %v1347 = vpop.f32.mrf.mxu0
    %v1348 = vpop.f32.mrf.mxu0
    %v1349 = vadd.f32 0.0, %v1348
    %v1350 = vpop.f32.mrf.mxu0
    %1351 = vdwg.mxu0
    %v1352 = vpack.c.bf16 %v1341, %v1338
    %v1353 = vpack.c.bf16 %v1349, %v1346
    %v1354 = vld [vmem:[#allocation7] sm:$0xf]
    %v1355 = vld [vmem:[#allocation7 + $0x4] sm:$0xf]
    %v1356 = vld [vmem:[#allocation7 + $0x8] sm:$0xf]
    %v1357 = vld [vmem:[#allocation7 + $0xc] sm:$0xf]
    %v1358 = vld [vmem:[#allocation8] sm:$0x1]
    %v1360 = vlaneseq
    %v1361 = vshrl.u32 %v1360, 7
    %v1362 = vsub.s32 0, %v1361
    %v1363 = vrot.slane %v1358, %v1362
    %v1369 = vunpack.c.l.b16 %v1354
    %v1370 = vunpack.c.l.b16 %v1355
    %v1371 = vunpack.c.l.b16 %v1356
    %v1372 = vunpack.c.l.b16 %v1357
    %v1373 = vpack.c.b16 %v1370, %v1369
    %v1374 = vpack.c.b16 %v1372, %v1371
    %v1378 = vsel %vm207, %v1352, 0
    %v1381 = vsel %vm207, %v1353, 0
    %1383 = vmatprep.subr.bf16.mxu0 0
    %1384 = vmatpush1.bf16.msra.mxu0 0
    %1385 = vmatprep.subr.bf16.mxu0 0
    %1386 = vmatpush1.bf16.msra.mxu0 0
    %1387 = vmatprep.subr.bf16.mxu0 0
    %1388 = vmatpush1.bf16.msra.mxu0 0
    %1389 = vmatprep.subr.bf16.mxu0 0
    %1390 = vmatpush1.bf16.msra.mxu0 0
    %1391 = vmatprep.subr.bf16.mxu0 0
    %1392 = vmatpush1.bf16.msra.mxu0 0
    %1393 = vmatprep.subr.bf16.mxu0 0
    %1394 = vmatpush1.bf16.msra.mxu0 0
    %1395 = vmatprep.subr.bf16.mxu0 0
    %1396 = vmatpush1.bf16.msra.mxu0 %v1374
    %1397 = vmatprep.subr.bf16.mxu0 0
    %1398 = vmatpush1.bf16.msra.mxu0 %v1373
    %1399 = vmatprep.subr.bf16.mxu0 0
    %1400 = vmatpush2.bf16.msra.mxu0 0
    %1401 = vmatprep.subr.bf16.mxu0 0
    %1402 = vmatpush2.bf16.msra.mxu0 0
    %1403 = vmatprep.subr.bf16.mxu0 0
    %1404 = vmatpush2.bf16.msra.mxu0 0
    %1405 = vmatprep.subr.bf16.mxu0 0
    %1406 = vmatpush2.bf16.msra.mxu0 0
    %1407 = vmatprep.subr.bf16.mxu0 0
    %1408 = vmatpush2.bf16.msra.mxu0 0
    %1409 = vmatprep.subr.bf16.mxu0 0
    %1410 = vmatpush2.bf16.msra.mxu0 0
    %1411 = vmatprep.subr.bf16.mxu0 0
    %1412 = vmatpush2.bf16.msra.mxu0 0
    %1413 = vmatprep.subr.bf16.mxu0 0
    %1414 = vmatpush2.bf16.msra.mxu0 0
    %1415 = vmatprep.mubr.bf16.mxu0 0
    %1416 = vmatmul.mubr.bf16.gmra.mxu0 %v1378
    %v1417 = vpop.f32.mrf.mxu0
    %v1418 = vadd.f32 %v1363, %v1417
    %v1419 = vpop.f32.mrf.mxu0
    %v1420 = vpop.f32.mrf.mxu0
    %v1421 = vadd.f32 %v1363, %v1420
    %v1422 = vpop.f32.mrf.mxu0
    %1423 = vmatprep.mubr.bf16.mxu0 0
    %1424 = vmatmul.mubr.bf16.gmra.mxu0 %v1381
    %v1425 = vpop.f32.mrf.mxu0
    %v1426 = vadd.f32 %v1363, %v1425
    %v1427 = vpop.f32.mrf.mxu0
    %v1428 = vpop.f32.mrf.mxu0
    %v1429 = vadd.f32 %v1363, %v1428
    %v1430 = vpop.f32.mrf.mxu0
    %1431 = vdwg.mxu0
    %v1432 = vadd.f32 %v201, %v1418
    %v1433 = vadd.f32 %v202, %v1421
    %v1434 = vadd.f32 %v203, %v1426
    %v1435 = vadd.f32 %v204, %v1429
    %v1436 = vld [vmem:[#allocation10] sm:$0x1]
    %v1437 = vld [vmem:[#allocation11] sm:$0x1]
    %v1438 = vsel %vm207, %v1432, 0.0
    %1439 = vadd.xlane.f32.xlu0 %v1438
    %v1440 = vpop.xlane.xlu0 %1439
    %v1441 = vsel %vm207, %v1433, 0.0
    %1442 = vadd.xlane.f32.xlu0 %v1441
    %v1443 = vpop.xlane.xlu0 %1442
    %v1444 = vsel %vm207, %v1434, 0.0
    %1445 = vadd.xlane.f32.xlu0 %v1444
    %v1446 = vpop.xlane.xlu0 %1445
    %v1447 = vsel %vm207, %v1435, 0.0
    %1448 = vadd.xlane.f32.xlu0 %v1447
    %v1449 = vpop.xlane.xlu0 %1448
    %v1450 = vmul.f32 %v1440, %v220
    %v1451 = vmul.f32 %v1443, %v220
    %v1452 = vmul.f32 %v1446, %v220
    %v1453 = vmul.f32 %v1449, %v220
    %v1454 = vsub.f32 %v1432, %v1450
    %v1455 = vsub.f32 %v1433, %v1451
    %v1456 = vsub.f32 %v1434, %v1452
    %v1457 = vsub.f32 %v1435, %v1453
    %v1458 = vmul.f32 %v1454, %v1454
    %v1459 = vmul.f32 %v1455, %v1455
    %v1460 = vmul.f32 %v1456, %v1456
    %v1461 = vmul.f32 %v1457, %v1457
    %v1462 = vsel %vm207, %v1458, 0.0
    %1463 = vadd.xlane.f32.xlu0 %v1462
    %v1464 = vpop.xlane.xlu0 %1463
    %v1465 = vsel %vm207, %v1459, 0.0
    %1466 = vadd.xlane.f32.xlu0 %v1465
    %v1467 = vpop.xlane.xlu0 %1466
    %v1468 = vsel %vm207, %v1460, 0.0
    %1469 = vadd.xlane.f32.xlu0 %v1468
    %v1470 = vpop.xlane.xlu0 %1469
    %v1471 = vsel %vm207, %v1461, 0.0
    %1472 = vadd.xlane.f32.xlu0 %v1471
    %v1473 = vpop.xlane.xlu0 %1472
    %v1474 = vmul.f32 %v1464, %v220
    %v1475 = vmul.f32 %v1467, %v220
    %v1476 = vmul.f32 %v1470, %v220
    %v1477 = vmul.f32 %v1473, %v220
    %v1478 = vadd.f32 %v1474, 1e-05
    %v1479 = vadd.f32 %v1475, 1e-05
    %v1480 = vadd.f32 %v1476, 1e-05
    %v1481 = vadd.f32 %v1477, 1e-05
    %v1482 = vrsqrt.pop %v1478
    %v1483 = vrsqrt.pop %v1479
    %v1484 = vrsqrt.pop %v1480
    %v1485 = vrsqrt.pop %v1481
    %v1486 = vmul.f32 %v1454, %v1482
    %v1487 = vmul.f32 %v1455, %v1483
    %v1488 = vmul.f32 %v1456, %v1484
    %v1489 = vmul.f32 %v1457, %v1485
    %v1491 = vlaneseq
    %v1492 = vshrl.u32 %v1491, 7
    %v1493 = vsub.s32 0, %v1492
    %v1494 = vrot.slane %v1436, %v1493
    %v1496 = vmul.f32 %v1486, %v1494
    %v1497 = vmul.f32 %v1487, %v1494
    %v1498 = vmul.f32 %v1488, %v1494
    %v1499 = vmul.f32 %v1489, %v1494
    %v1501 = vlaneseq
    %v1502 = vshrl.u32 %v1501, 7
    %v1503 = vsub.s32 0, %v1502
    %v1504 = vrot.slane %v1437, %v1503
    %v1506 = vadd.f32 %v1496, %v1504
    %v1507 = vadd.f32 %v1497, %v1504
    %v1508 = vadd.f32 %v1498, %v1504
    %v1509 = vadd.f32 %v1499, %v1504
    %v1510 = vpack.c.bf16 %v1507, %v1506
    %v1511 = vpack.c.bf16 %v1509, %v1508
    %v1512 = vld [vmem:[#allocation13] sm:$0xf]
    %v1513 = vld [vmem:[#allocation13 + $0x4] sm:$0xf]
    %v1514 = vld [vmem:[#allocation13 + $0x8] sm:$0xf]
    %v1515 = vld [vmem:[#allocation13 + $0xc] sm:$0xf]
    %v1516 = vld [vmem:[#allocation14] sm:$0x1]
    %v1518 = vlaneseq
    %v1519 = vshrl.u32 %v1518, 7
    %v1520 = vsub.s32 0, %v1519
    %v1521 = vrot.slane %v1516, %v1520
    %v1527 = vunpack.c.l.b16 %v1512
    %v1528 = vunpack.c.l.b16 %v1513
    %v1529 = vunpack.c.l.b16 %v1514
    %v1530 = vunpack.c.l.b16 %v1515
    %v1531 = vpack.c.b16 %v1528, %v1527
    %v1532 = vpack.c.b16 %v1530, %v1529
    %v1536 = vsel %vm207, %v1510, 0
    %v1539 = vsel %vm207, %v1511, 0
    %1541 = vmatprep.subr.bf16.mxu0 0
    %1542 = vmatpush1.bf16.msra.mxu0 0
    %1543 = vmatprep.subr.bf16.mxu0 0
    %1544 = vmatpush1.bf16.msra.mxu0 0
    %1545 = vmatprep.subr.bf16.mxu0 0
    %1546 = vmatpush1.bf16.msra.mxu0 0
    %1547 = vmatprep.subr.bf16.mxu0 0
    %1548 = vmatpush1.bf16.msra.mxu0 0
    %1549 = vmatprep.subr.bf16.mxu0 0
    %1550 = vmatpush1.bf16.msra.mxu0 0
    %1551 = vmatprep.subr.bf16.mxu0 0
    %1552 = vmatpush1.bf16.msra.mxu0 0
    %1553 = vmatprep.subr.bf16.mxu0 0
    %1554 = vmatpush1.bf16.msra.mxu0 %v1532
    %1555 = vmatprep.subr.bf16.mxu0 0
    %1556 = vmatpush1.bf16.msra.mxu0 %v1531
    %1557 = vmatprep.subr.bf16.mxu0 0
    %1558 = vmatpush2.bf16.msra.mxu0 0
    %1559 = vmatprep.subr.bf16.mxu0 0
    %1560 = vmatpush2.bf16.msra.mxu0 0
    %1561 = vmatprep.subr.bf16.mxu0 0
    %1562 = vmatpush2.bf16.msra.mxu0 0
    %1563 = vmatprep.subr.bf16.mxu0 0
    %1564 = vmatpush2.bf16.msra.mxu0 0
    %1565 = vmatprep.subr.bf16.mxu0 0
    %1566 = vmatpush2.bf16.msra.mxu0 0
    %1567 = vmatprep.subr.bf16.mxu0 0
    %1568 = vmatpush2.bf16.msra.mxu0 0
    %1569 = vmatprep.subr.bf16.mxu0 0
    %1570 = vmatpush2.bf16.msra.mxu0 0
    %1571 = vmatprep.subr.bf16.mxu0 0
    %1572 = vmatpush2.bf16.msra.mxu0 0
    %1573 = vmatprep.mubr.bf16.mxu0 0
    %1574 = vmatmul.mubr.bf16.gmra.mxu0 %v1536
    %v1575 = vpop.f32.mrf.mxu0
    %v1576 = vadd.f32 %v1521, %v1575
    %v1577 = vpop.f32.mrf.mxu0
    %v1578 = vpop.f32.mrf.mxu0
    %v1579 = vadd.f32 %v1521, %v1578
    %v1580 = vpop.f32.mrf.mxu0
    %1581 = vmatprep.mubr.bf16.mxu0 0
    %1582 = vmatmul.mubr.bf16.gmra.mxu0 %v1539
    %v1583 = vpop.f32.mrf.mxu0
    %v1584 = vadd.f32 %v1521, %v1583
    %v1585 = vpop.f32.mrf.mxu0
    %v1586 = vpop.f32.mrf.mxu0
    %v1587 = vadd.f32 %v1521, %v1586
    %v1588 = vpop.f32.mrf.mxu0
    %1589 = vdwg.mxu0
    %v1590 = vmul.f32 %v1576, 0.5
    %v1591 = vmul.f32 %v1579, 0.5
    %v1592 = vmul.f32 %v1584, 0.5
    %v1593 = vmul.f32 %v1587, 0.5
    %v1594 = vmul.f32 %v1576, 0.70710677
    %v1595 = vmul.f32 %v1579, 0.70710677
    %v1596 = vmul.f32 %v1584, 0.70710677
    %v1597 = vmul.f32 %v1587, 0.70710677
    %v1598 = verf.f32.pop %v1594
    %v1599 = verf.f32.pop %v1595
    %v1600 = verf.f32.pop %v1596
    %v1601 = verf.f32.pop %v1597
    %v1602 = vadd.f32 %v1598, 1.0
    %v1603 = vadd.f32 %v1599, 1.0
    %v1604 = vadd.f32 %v1600, 1.0
    %v1605 = vadd.f32 %v1601, 1.0
    %v1606 = vmul.f32 %v1590, %v1602
    %v1607 = vmul.f32 %v1591, %v1603
    %v1608 = vmul.f32 %v1592, %v1604
    %v1609 = vmul.f32 %v1593, %v1605
    %v1610 = vpack.c.bf16 %v1607, %v1606
    %v1611 = vpack.c.bf16 %v1609, %v1608
    %v1612 = vld [vmem:[%s11] sm:$0xf]
    %v1613 = vld [vmem:[%s11 + $0x4] sm:$0xf]
    %v1614 = vld [vmem:[%s11 + $0x8] sm:$0xf]
    %v1615 = vld [vmem:[%s11 + $0xc] sm:$0xf]
    %v1616 = vld [vmem:[%s11 + $0x10] sm:$0xf]
    %v1617 = vld [vmem:[%s11 + $0x14] sm:$0xf]
    %v1618 = vld [vmem:[%s11 + $0x18] sm:$0xf]
    %v1619 = vld [vmem:[%s11 + $0x1c] sm:$0xf]
    %v1620 = vld [vmem:[%s11 + $0x20] sm:$0xf]
    %v1621 = vld [vmem:[%s11 + $0x24] sm:$0xf]
    %v1622 = vld [vmem:[%s11 + $0x28] sm:$0xf]
    %v1623 = vld [vmem:[%s11 + $0x2c] sm:$0xf]
    %v1624 = vld [vmem:[%s11 + $0x30] sm:$0xf]
    %v1625 = vld [vmem:[%s11 + $0x34] sm:$0xf]
    %v1626 = vld [vmem:[%s11 + $0x38] sm:$0xf]
    %v1627 = vld [vmem:[%s11 + $0x3c] sm:$0xf]
    %v1628 = vld [vmem:[%s12] sm:$0x1]
    %v1630 = vlaneseq
    %v1631 = vshrl.u32 %v1630, 7
    %v1632 = vsub.s32 0, %v1631
    %v1633 = vrot.slane %v1628, %v1632
    %v1651 = vunpack.c.l.b16 %v1612
    %v1652 = vunpack.c.l.b16 %v1613
    %v1653 = vunpack.c.l.b16 %v1614
    %v1654 = vunpack.c.l.b16 %v1615
    %v1655 = vunpack.c.l.b16 %v1616
    %v1656 = vunpack.c.l.b16 %v1617
    %v1657 = vunpack.c.l.b16 %v1618
    %v1658 = vunpack.c.l.b16 %v1619
    %v1659 = vunpack.c.l.b16 %v1620
    %v1660 = vunpack.c.l.b16 %v1621
    %v1661 = vunpack.c.l.b16 %v1622
    %v1662 = vunpack.c.l.b16 %v1623
    %v1663 = vunpack.c.l.b16 %v1624
    %v1664 = vunpack.c.l.b16 %v1625
    %v1665 = vunpack.c.l.b16 %v1626
    %v1666 = vunpack.c.l.b16 %v1627
    %v1667 = vpack.c.b16 %v1652, %v1651
    %v1668 = vpack.c.b16 %v1654, %v1653
    %v1669 = vpack.c.b16 %v1656, %v1655
    %v1670 = vpack.c.b16 %v1658, %v1657
    %v1671 = vpack.c.b16 %v1660, %v1659
    %v1672 = vpack.c.b16 %v1662, %v1661
    %v1673 = vpack.c.b16 %v1664, %v1663
    %v1674 = vpack.c.b16 %v1666, %v1665
    %1683 = vmatprep.subr.bf16.mxu0 0
    %1684 = vmatpush1.bf16.msra.mxu0 %v1674
    %1685 = vmatprep.subr.bf16.mxu0 0
    %1686 = vmatpush1.bf16.msra.mxu0 %v1673
    %1687 = vmatprep.subr.bf16.mxu0 0
    %1688 = vmatpush1.bf16.msra.mxu0 %v1672
    %1689 = vmatprep.subr.bf16.mxu0 0
    %1690 = vmatpush1.bf16.msra.mxu0 %v1671
    %1691 = vmatprep.subr.bf16.mxu0 0
    %1692 = vmatpush1.bf16.msra.mxu0 %v1670
    %1693 = vmatprep.subr.bf16.mxu0 0
    %1694 = vmatpush1.bf16.msra.mxu0 %v1669
    %1695 = vmatprep.subr.bf16.mxu0 0
    %1696 = vmatpush1.bf16.msra.mxu0 %v1668
    %1697 = vmatprep.subr.bf16.mxu0 0
    %1698 = vmatpush1.bf16.msra.mxu0 %v1667
    %1699 = vmatprep.subr.bf16.mxu0 0
    %1700 = vmatpush2.bf16.msra.mxu0 0
    %1701 = vmatprep.subr.bf16.mxu0 0
    %1702 = vmatpush2.bf16.msra.mxu0 0
    %1703 = vmatprep.subr.bf16.mxu0 0
    %1704 = vmatpush2.bf16.msra.mxu0 0
    %1705 = vmatprep.subr.bf16.mxu0 0
    %1706 = vmatpush2.bf16.msra.mxu0 0
    %1707 = vmatprep.subr.bf16.mxu0 0
    %1708 = vmatpush2.bf16.msra.mxu0 0
    %1709 = vmatprep.subr.bf16.mxu0 0
    %1710 = vmatpush2.bf16.msra.mxu0 0
    %1711 = vmatprep.subr.bf16.mxu0 0
    %1712 = vmatpush2.bf16.msra.mxu0 0
    %1713 = vmatprep.subr.bf16.mxu0 0
    %1714 = vmatpush2.bf16.msra.mxu0 0
    %1715 = vmatprep.mubr.bf16.mxu0 0
    %1716 = vmatmul.mubr.bf16.gmra.mxu0 %v1610
    %v1717 = vpop.f32.mrf.mxu0
    %v1718 = vadd.f32 %v1633, %v1717
    %v1719 = vpop.f32.mrf.mxu0
    %v1720 = vpop.f32.mrf.mxu0
    %v1721 = vadd.f32 %v1633, %v1720
    %v1722 = vpop.f32.mrf.mxu0
    %1723 = vmatprep.mubr.bf16.mxu0 0
    %1724 = vmatmul.mubr.bf16.gmra.mxu0 %v1611
    %v1725 = vpop.f32.mrf.mxu0
    %v1726 = vadd.f32 %v1633, %v1725
    %v1727 = vpop.f32.mrf.mxu0
    %v1728 = vpop.f32.mrf.mxu0
    %v1729 = vadd.f32 %v1633, %v1728
    %v1730 = vpop.f32.mrf.mxu0
    %1731 = vdwg.mxu0
    %v1732 = vadd.f32 %v1432, %v1718
    %v1733 = vadd.f32 %v1433, %v1721
    %v1734 = vadd.f32 %v1434, %v1726
    %v1735 = vadd.f32 %v1435, %v1729
    %1736 = vst.msk [vmem:[#allocation20] sm:$0xff] %vm207, %v1732
    %1737 = vst.msk [vmem:[#allocation20 + $0x8] sm:$0xff] %vm207, %v1733
    %1738 = vst.msk [vmem:[#allocation20 + $0x10] sm:$0xff] %vm207, %v1734
    %1739 = vst.msk [vmem:[#allocation20 + $0x18] sm:$0xff] %vm207, %v1735
    // Predicated region
    $region118: #{block_forward.1} parent=1 // pred_check
      _
    $region119: #{block_forward.1} parent=1 // pred_check_branch
      %1741 = sbr.rel (0) target = $region121
    $region120: #{block_forward.1} parent=1 // pred_region
      %s1743 = ssub.s32 512, 512
      %1744 = vsyncadd [#allocation4], %s1743
      %s1745 = sshll.u32 [#allocation20], 4
      %s1746 = int_to_ptr.vmem [resolvable:$true] %s1745
      %1751 = dma.vmem_to_hbm [thread:$0]  %s1746, 512, %s18, [#allocation4], 128, 128, 8
    $region121: #{block_forward.1} parent=1 // pred_fallthru
      _
    // Predicated region
    $region122: #{block_forward.1} parent=1 // pred_check
      _
    $region123: #{block_forward.1} parent=1 // pred_check_branch
      %1753 = sbr.rel (0) target = $region125
    $region124: #{block_forward.1} parent=1 // pred_region
      %s1755 = ssub.s32 512, 512
      %1756 = vsyncadd [#allocation22], %s1755
      %s1757 = sshll.u32 [#allocation21], 4
      %s1758 = int_to_ptr.vmem [resolvable:$true] %s1757
      %1763 = dma.vmem_to_hbm [thread:$0]  %s1758, 512, %s19, [#allocation22], 128, 128, 8
    $region125: #{block_forward.1} parent=1 // pred_fallthru
      _
    // Predicated region
    $region126: #{block_forward.1} parent=1 // pred_check
      _
    $region127: #{block_forward.1} parent=1 // pred_check_branch
      %1765 = sbr.rel (0) target = $region129
    $region128: #{block_forward.1} parent=1 // pred_region
      %1766 = dma.done [#allocation4], 512
    $region129: #{block_forward.1} parent=1 // pred_fallthru
      _
    // Predicated region
    $region130: #{block_forward.1} parent=1 // pred_check
      _
    $region131: #{block_forward.1} parent=1 // pred_check_branch
      %1768 = sbr.rel (0) target = $region133
    $region132: #{block_forward.1} parent=1 // pred_region
      %1769 = dma.done [#allocation22], 512
    $region133: #{block_forward.1} parent=1 // pred_fallthru
      _
    %1770 = vsyncpa [#allocation3], 1
    %1771 = vsyncpa [#allocation6], 1
    %1772 = vsyncpa [#allocation9], 1
    %1773 = vsyncpa [#allocation12], 1
    %1774 = vsyncpa [#allocation15], 1
    %1775 = vsyncpa [#allocation18], 1
    %1776 = vsyncpa [#allocation4], 1
    %1777 = vsyncpa [#allocation22], 1

</llo_original>
